<compile_context>
chip_gen: v5e
topology: v5e:2x2
jax: 0.10.0
libtpu: 0.0.40
codegen_flags: <defaults>
</compile_context>

<pallas_src>
import jax
import jax.numpy as jnp
from jax.experimental import pallas as pl
from jax.experimental.pallas import tpu as pltpu


def _attention_decoder_kernel(
    pred_ref,                                   # (B,) int32, SMEM (scalar prefetch)
    enc_ref, h0_ref, emb_hbm_ref,               # (TB,T,H) bf16 | (TB,H) f32 | (C,H) f32 in HBM
    w_att_ref, b_att_ref, w_aw_ref, b_aw_ref,   # (H,H) bf16 | (1,H) f32 | (1,H) f32 | (1,1) f32 SMEM
    w_comb_ref, b_comb_ref,                     # (H,H) bf16 | (1,H) f32
    w_ih_ref, b_ih_ref, w_hh_ref, b_hh_ref,     # (3,H,H) bf16 | (3,1,H) f32  (gate order r,z,n)
    w_fc_ref, b_fc_ref,                         # (H,C) bf16 | (1,C) f32
    logp_ref, hnew_ref, attw_ref,               # outputs: (TB,C) (TB,H) (TB,T) f32
    emb_buf, gather_sem):                       # scratch: (TB,H) f32 VMEM, DMA sems (TB,)

    TB = emb_buf.shape[0]
    b0 = pl.program_id(0) * TB

    # --- 1. Gather only the TB embedding rows this tile needs, straight from HBM.
    def _row_copy(i):
        idx = pred_ref[b0 + i]
        return pltpu.make_async_copy(
            emb_hbm_ref.at[pl.ds(idx, 1), :],
            emb_buf.at[pl.ds(i, 1), :],
            gather_sem.at[i])
    for i in range(TB):
        _row_copy(i).start()                    # issued early; overlaps the matmul below

    enc = enc_ref[...].astype(jnp.float32)      # (TB, T, H) tile-scoped f32
    h = h0_ref[...]                             # (TB, H) f32

    # --- 2. attention_linear(hidden[0])  (MXU, bf16 in / f32 acc)
    atte_x = jnp.dot(h.astype(jnp.bfloat16), w_att_ref[...],
                     preferred_element_type=jnp.float32) + b_att_ref[...]

    for i in range(TB):
        _row_copy(i).wait()
    emb = emb_buf[...]                          # (TB, H) f32
    aw_vec = jnp.tanh(atte_x + emb)             # (TB, H)

    # --- 3. scores[b,t] = enc[b,t,:]·w_aw + aw_vec[b,:]·w_aw + b_aw   (VPU mul + lane reduce;
    #        no (B,T,H) broadcast temporary, no B*T reshape, no width-1 MXU matmul)
    w_aw = w_aw_ref[...]                                          # (1, H) f32
    enc_scores = jnp.sum(enc * w_aw[:, None, :], axis=-1)         # (TB, T)
    vec_score = jnp.sum(aw_vec * w_aw, axis=-1, keepdims=True)    # (TB, 1)
    scores = enc_scores + vec_score + b_aw_ref[0, 0]

    # softmax over T (dim=1 in the PyTorch module)
    m = jnp.max(scores, axis=1, keepdims=True)
    p = jnp.exp(scores - m)
    denom = jnp.sum(p, axis=1, keepdims=True)
    attw = p * pl.reciprocal(denom, approx=True)                  # EUP reciprocal
    attw_ref[...] = attw

    # --- 4. context: (TB,T,1)*(TB,T,H) summed over T — keep the M=1 contraction off the MXU
    ctx = jnp.sum(attw[:, :, None] * enc, axis=1)                 # (TB, H)

    # --- 5. atten_combine + leaky_relu (negative_slope = 0.01)
    comb = jnp.dot(ctx.astype(jnp.bfloat16), w_comb_ref[...],
                   preferred_element_type=jnp.float32) + b_comb_ref[...]
    x = jnp.where(comb > 0, comb, 0.01 * comb)

    # --- 6. single-step GRU: one lane-aligned (H,H) matmul per gate (PyTorch order r, z, n)
    x_b = x.astype(jnp.bfloat16)
    h_b = h.astype(jnp.bfloat16)

    def gate(g):
        gi = jnp.dot(x_b, w_ih_ref[g], preferred_element_type=jnp.float32) + b_ih_ref[g]
        gh = jnp.dot(h_b, w_hh_ref[g], preferred_element_type=jnp.float32) + b_hh_ref[g]
        return gi, gh

    gi_r, gh_r = gate(0)
    gi_z, gh_z = gate(1)
    gi_n, gh_n = gate(2)
    r = jax.nn.sigmoid(gi_r + gh_r)
    z = jax.nn.sigmoid(gi_z + gh_z)
    n = jnp.tanh(gi_n + r * gh_n)
    h_new = (1.0 - z) * n + z * h                                 # (TB, H) f32
    hnew_ref[...] = h_new

    # --- 7. fc + stable log_softmax over classes (f32)
    logits = jnp.dot(h_new.astype(jnp.bfloat16), w_fc_ref[...],
                     preferred_element_type=jnp.float32) + b_fc_ref[...]
    lm = jnp.max(logits, axis=1, keepdims=True)
    lse = lm + jnp.log(jnp.sum(jnp.exp(logits - lm), axis=1, keepdims=True))
    logp_ref[...] = logits - lse


def _pick_batch_tile(B):
    for tb in (256, 128, 64, 32, 16, 8):
        if B % tb == 0:
            return tb
    return B  # small / odd batch: single full-dim tile (satisfies the tiling rule)


def attention_decoder(encoder_output, hidden, last_predict, params):
    """encoder_output: (B,T,H) float, hidden: (1,B,H) float, last_predict: (B,) int."""
    B, T, H = encoder_output.shape
    C = params["emb_w"].shape[0]
    TB = _pick_batch_tile(B)

    enc = encoder_output.astype(jnp.bfloat16)
    h0 = hidden[0].astype(jnp.float32)
    pred = last_predict.astype(jnp.int32)

    bf = lambda a: a.astype(jnp.bfloat16)
    f32 = lambda a: a.astype(jnp.float32)

    grid_spec = pltpu.PrefetchScalarGridSpec(
        num_scalar_prefetch=1,
        grid=(B // TB,),
        in_specs=[
            pl.BlockSpec((TB, T, H), lambda i, p: (i, 0, 0)),     # enc tile (bf16)
            pl.BlockSpec((TB, H), lambda i, p: (i, 0)),           # h0 tile (f32)
            pl.BlockSpec(memory_space=pl.ANY),                    # emb table stays in HBM
            pl.BlockSpec((H, H), lambda i, p: (0, 0)),            # w_att
            pl.BlockSpec((1, H), lambda i, p: (0, 0)),            # b_att
            pl.BlockSpec((1, H), lambda i, p: (0, 0)),            # w_aw (row form)
            pl.BlockSpec(memory_space=pltpu.MemorySpace.SMEM),    # b_aw scalar
            pl.BlockSpec((H, H), lambda i, p: (0, 0)),            # w_comb
            pl.BlockSpec((1, H), lambda i, p: (0, 0)),            # b_comb
            pl.BlockSpec((3, H, H), lambda i, p: (0, 0, 0)),      # w_ih (r|z|n)
            pl.BlockSpec((3, 1, H), lambda i, p: (0, 0, 0)),      # b_ih
            pl.BlockSpec((3, H, H), lambda i, p: (0, 0, 0)),      # w_hh
            pl.BlockSpec((3, 1, H), lambda i, p: (0, 0, 0)),      # b_hh
            pl.BlockSpec((H, C), lambda i, p: (0, 0)),            # w_fc
            pl.BlockSpec((1, C), lambda i, p: (0, 0)),            # b_fc
        ],
        out_specs=(
            pl.BlockSpec((TB, C), lambda i, p: (i, 0)),           # log_softmax output
            pl.BlockSpec((TB, H), lambda i, p: (i, 0)),           # new hidden (squeezed)
            pl.BlockSpec((TB, T), lambda i, p: (i, 0)),           # attention weights
        ),
        scratch_shapes=[
            pltpu.VMEM((TB, H), jnp.float32),                     # gathered embedding rows
            pltpu.SemaphoreType.DMA((TB,)),                       # one DMA sem per row
        ],
    )

    logp, h_new, attw = pl.pallas_call(
        _attention_decoder_kernel,
        out_shape=(
            jax.ShapeDtypeStruct((B, C), jnp.float32),
            jax.ShapeDtypeStruct((B, H), jnp.float32),
            jax.ShapeDtypeStruct((B, T), jnp.float32),
        ),
        grid_spec=grid_spec,
        compiler_params=pltpu.CompilerParams(
            dimension_semantics=("parallel",)),                   # shards batch over v7x's 2 TCs
    )(
        pred, enc, h0, f32(params["emb_w"]),
        bf(params["w_att"]), f32(params["b_att"]),
        f32(params["w_aw"]), f32(params["b_aw"]),
        bf(params["w_comb"]), f32(params["b_comb"]),
        bf(params["w_ih"]), f32(params["b_ih"]),
        bf(params["w_hh"]), f32(params["b_hh"]),
        bf(params["w_fc"]), f32(params["b_fc"]),
    )
    return logp, h_new[None, :, :], attw                          # match PyTorch (x, hidden, attw)


def init_params(key, hidden_size, classes):
    """Deterministic synthetic init; shapes match the nn.Module's layers (weights pre-transposed
    to (in, out); GRU weights stacked per-gate as (3, H, H) in r,z,n order)."""
    H, C = hidden_size, classes
    ks = jax.random.split(key, 12)

    def u(k, shape, scale):
        return (jax.random.uniform(k, shape, jnp.float32) - 0.5) * 2.0 * scale

    s = 1.0 / jnp.sqrt(H)
    return {
        "emb_w":  u(ks[0], (C, H), 1.0),                  # nn.Embedding(classes, H)
        "w_att":  u(ks[1], (H, H), s),                    # attention_linear (in, out)
        "b_att":  u(ks[2], (1, H), s),
        "w_aw":   u(ks[3], (1, H), s),                    # attention_weights_linear weight row
        "b_aw":   u(ks[4], (1, 1), s),
        "w_comb": u(ks[5], (H, H), s),                    # atten_combine
        "b_comb": u(ks[6], (1, H), s),
        "w_ih":   u(ks[7], (3, H, H), s),                 # GRU input weights per gate (r,z,n)
        "b_ih":   u(ks[8], (3, 1, H), s),
        "w_hh":   u(ks[9], (3, H, H), s),                 # GRU hidden weights per gate (r,z,n)
        "b_hh":   u(ks[10], (3, 1, H), s),
        "w_fc":   u(ks[11], (H, C), s),                   # fc
        "b_fc":   jnp.zeros((1, C), jnp.float32),
    }


if __name__ == "__main__":
    B, T, H, C = 2, 8, 32, 10
    key = jax.random.PRNGKey(0)
    k_enc, k_hid, k_pred, k_par = jax.random.split(key, 4)

    encoder_output = jax.random.normal(k_enc, (B, T, H), jnp.float32)
    hidden = jax.random.normal(k_hid, (1, B, H), jnp.float32)
    last_predict = jax.random.randint(k_pred, (B,), 0, C, jnp.int32)
    params = init_params(k_par, H, C)

    logp, h_new, attw = attention_decoder(encoder_output, hidden, last_predict, params)
    jax.block_until_ready((logp, h_new, attw))

    assert logp.shape == (B, C)
    assert h_new.shape == (1, B, H)
    assert attw.shape == (B, T)
    assert bool(jnp.all(jnp.isfinite(logp)))
    assert bool(jnp.all(jnp.isfinite(h_new)))
    assert bool(jnp.all(jnp.isfinite(attw)))
    # log_softmax rows normalize (computed stably in f32 inside the kernel)
    assert bool(jnp.all(jnp.abs(jnp.sum(jnp.exp(logp), axis=1) - 1.0) < 1e-3))
    print("KERNEL_OK")
</pallas_src>

<mosaic_0001>
module attributes {stable_mosaic.version = 11 : i64} {
  func.func @_attention_decoder_kernel(%arg0: i32, %arg1: memref<2xi32, #tpu.memory_space<smem>>, %arg2: memref<2x8x32xbf16, #tpu.memory_space<vmem>>, %arg3: memref<2x32xf32, #tpu.memory_space<vmem>>, %arg4: memref<10x32xf32, #tpu.memory_space<any>>, %arg5: memref<32x32xbf16, #tpu.memory_space<vmem>>, %arg6: memref<1x32xf32, #tpu.memory_space<vmem>>, %arg7: memref<1x32xf32, #tpu.memory_space<vmem>>, %arg8: memref<1x1xf32, #tpu.memory_space<smem>>, %arg9: memref<32x32xbf16, #tpu.memory_space<vmem>>, %arg10: memref<1x32xf32, #tpu.memory_space<vmem>>, %arg11: memref<3x32x32xbf16, #tpu.memory_space<vmem>>, %arg12: memref<3x1x32xf32, #tpu.memory_space<vmem>>, %arg13: memref<3x32x32xbf16, #tpu.memory_space<vmem>>, %arg14: memref<3x1x32xf32, #tpu.memory_space<vmem>>, %arg15: memref<32x10xbf16, #tpu.memory_space<vmem>>, %arg16: memref<1x10xf32, #tpu.memory_space<vmem>>, %arg17: memref<2x10xf32, #tpu.memory_space<vmem>>, %arg18: memref<2x32xf32, #tpu.memory_space<vmem>>, %arg19: memref<2x8xf32, #tpu.memory_space<vmem>>, %arg20: memref<2x32xf32, #tpu.memory_space<vmem>>, %arg21: memref<2x!tpu.dma_semaphore, #tpu.memory_space<semaphore_mem>>) attributes {dimension_semantics = [#tpu.dimension_semantics<parallel>], iteration_bounds = array<i64: 1>, scalar_prefetch = 1 : i64, scratch_operands = 2 : i64, tpu.core_type = #tpu.core_type<tc>, window_params = [{transform_indices = @transform_0, window_bounds = array<i64: 2, 8, 32>}, {transform_indices = @transform_1, window_bounds = array<i64: 2, 32>}, {}, {pipeline_mode = #tpu.pipeline_mode<synchronous>, transform_indices = @transform_3, window_bounds = array<i64: 32, 32>}, {pipeline_mode = #tpu.pipeline_mode<synchronous>, transform_indices = @transform_4, window_bounds = array<i64: 1, 32>}, {pipeline_mode = #tpu.pipeline_mode<synchronous>, transform_indices = @transform_5, window_bounds = array<i64: 1, 32>}, {transform_indices = @transform_6, window_bounds = array<i64: 1, 1>}, {pipeline_mode = #tpu.pipeline_mode<synchronous>, transform_indices = @transform_7, window_bounds = array<i64: 32, 32>}, {pipeline_mode = #tpu.pipeline_mode<synchronous>, transform_indices = @transform_8, window_bounds = array<i64: 1, 32>}, {pipeline_mode = #tpu.pipeline_mode<synchronous>, transform_indices = @transform_9, window_bounds = array<i64: 3, 32, 32>}, {pipeline_mode = #tpu.pipeline_mode<synchronous>, transform_indices = @transform_10, window_bounds = array<i64: 3, 1, 32>}, {pipeline_mode = #tpu.pipeline_mode<synchronous>, transform_indices = @transform_11, window_bounds = array<i64: 3, 32, 32>}, {pipeline_mode = #tpu.pipeline_mode<synchronous>, transform_indices = @transform_12, window_bounds = array<i64: 3, 1, 32>}, {pipeline_mode = #tpu.pipeline_mode<synchronous>, transform_indices = @transform_13, window_bounds = array<i64: 32, 10>}, {pipeline_mode = #tpu.pipeline_mode<synchronous>, transform_indices = @transform_14, window_bounds = array<i64: 1, 10>}, {transform_indices = @transform_15, window_bounds = array<i64: 2, 10>}, {transform_indices = @transform_16, window_bounds = array<i64: 2, 32>}, {transform_indices = @transform_17, window_bounds = array<i64: 2, 8>}]} {
    %c2_i32 = arith.constant 2 : i32
    %0 = arith.muli %arg0, %c2_i32 : i32
    %c0_i32 = arith.constant 0 : i32
    %1 = arith.addi %0, %c0_i32 : i32
    %2 = arith.index_cast %1 : i32 to index
    %3 = memref.load %arg1[%2] : memref<2xi32, #tpu.memory_space<smem>>
    %c0_i32_0 = arith.constant 0 : i32
    %c0_i32_1 = arith.constant 0 : i32
    %4 = tpu.memref_slice %arg4[%3, %c0_i32_1] : memref<10x32xf32, #tpu.memory_space<any>> -> memref<1x32xf32, #tpu.memory_space<any>>
    %c0_i32_2 = arith.constant 0 : i32
    %c0_i32_3 = arith.constant 0 : i32
    %5 = tpu.memref_slice %arg20[%c0_i32_2, %c0_i32_3] : memref<2x32xf32, #tpu.memory_space<vmem>> -> memref<1x32xf32, #tpu.memory_space<vmem>>
    %6 = tpu.memref_slice %arg21[%c0_i32_0] : memref<2x!tpu.dma_semaphore, #tpu.memory_space<semaphore_mem>> -> memref<1x!tpu.dma_semaphore, #tpu.memory_space<semaphore_mem>>
    %7 = tpu.memref_squeeze %6 : memref<1x!tpu.dma_semaphore, #tpu.memory_space<semaphore_mem>> -> memref<!tpu.dma_semaphore, #tpu.memory_space<semaphore_mem>>
    tpu.enqueue_dma source(%4 : memref<1x32xf32, #tpu.memory_space<any>>) target(%5 : memref<1x32xf32, #tpu.memory_space<vmem>>) target_semaphore(%7 : memref<!tpu.dma_semaphore, #tpu.memory_space<semaphore_mem>>)
    %c1_i32 = arith.constant 1 : i32
    %8 = arith.addi %0, %c1_i32 : i32
    %9 = arith.index_cast %8 : i32 to index
    %10 = memref.load %arg1[%9] : memref<2xi32, #tpu.memory_space<smem>>
    %c1_i32_4 = arith.constant 1 : i32
    %c0_i32_5 = arith.constant 0 : i32
    %11 = tpu.memref_slice %arg4[%10, %c0_i32_5] : memref<10x32xf32, #tpu.memory_space<any>> -> memref<1x32xf32, #tpu.memory_space<any>>
    %c1_i32_6 = arith.constant 1 : i32
    %c0_i32_7 = arith.constant 0 : i32
    %12 = tpu.memref_slice %arg20[%c1_i32_6, %c0_i32_7] : memref<2x32xf32, #tpu.memory_space<vmem>> -> memref<1x32xf32, #tpu.memory_space<vmem>>
    %13 = tpu.memref_slice %arg21[%c1_i32_4] : memref<2x!tpu.dma_semaphore, #tpu.memory_space<semaphore_mem>> -> memref<1x!tpu.dma_semaphore, #tpu.memory_space<semaphore_mem>>
    %14 = tpu.memref_squeeze %13 : memref<1x!tpu.dma_semaphore, #tpu.memory_space<semaphore_mem>> -> memref<!tpu.dma_semaphore, #tpu.memory_space<semaphore_mem>>
    tpu.enqueue_dma source(%11 : memref<1x32xf32, #tpu.memory_space<any>>) target(%12 : memref<1x32xf32, #tpu.memory_space<vmem>>) target_semaphore(%14 : memref<!tpu.dma_semaphore, #tpu.memory_space<semaphore_mem>>)
    %c0 = arith.constant 0 : index
    %c0_8 = arith.constant 0 : index
    %c0_9 = arith.constant 0 : index
    %15 = vector.load %arg2[%c0, %c0_8, %c0_9] : memref<2x8x32xbf16, #tpu.memory_space<vmem>>, vector<2x8x32xbf16>
    %16 = arith.extf %15 : vector<2x8x32xbf16> to vector<2x8x32xf32>
    %c0_10 = arith.constant 0 : index
    %c0_11 = arith.constant 0 : index
    %17 = vector.load %arg3[%c0_10, %c0_11] : memref<2x32xf32, #tpu.memory_space<vmem>>, vector<2x32xf32>
    %18 = arith.truncf %17 : vector<2x32xf32> to vector<2x32xbf16>
    %c0_12 = arith.constant 0 : index
    %c0_13 = arith.constant 0 : index
    %19 = vector.load %arg5[%c0_12, %c0_13] : memref<32x32xbf16, #tpu.memory_space<vmem>>, vector<32x32xbf16>
    %cst = arith.constant dense<0.000000e+00> : vector<2x32xf32>
    %20 = tpu.matmul %18, %19, %cst {dimension_numbers = #tpu.dot_dimension_numbers<[1], [0], [0], [1], [0, 0, 1, 1], [], []>} : vector<2x32xbf16>, vector<32x32xbf16>, vector<2x32xf32> -> vector<2x32xf32>
    %c0_14 = arith.constant 0 : index
    %c0_15 = arith.constant 0 : index
    %21 = vector.load %arg6[%c0_14, %c0_15] : memref<1x32xf32, #tpu.memory_space<vmem>>, vector<1x32xf32>
    %22 = vector.broadcast %21 : vector<1x32xf32> to vector<2x32xf32>
    %23 = arith.addf %20, %22 : vector<2x32xf32>
    %c0_i32_16 = arith.constant 0 : i32
    %24 = arith.addi %0, %c0_i32_16 : i32
    %25 = arith.index_cast %24 : i32 to index
    %26 = memref.load %arg1[%25] : memref<2xi32, #tpu.memory_space<smem>>
    %c0_i32_17 = arith.constant 0 : i32
    %c0_i32_18 = arith.constant 0 : i32
    %27 = tpu.memref_slice %arg4[%26, %c0_i32_18] : memref<10x32xf32, #tpu.memory_space<any>> -> memref<1x32xf32, #tpu.memory_space<any>>
    %c0_i32_19 = arith.constant 0 : i32
    %c0_i32_20 = arith.constant 0 : i32
    %28 = tpu.memref_slice %arg20[%c0_i32_19, %c0_i32_20] : memref<2x32xf32, #tpu.memory_space<vmem>> -> memref<1x32xf32, #tpu.memory_space<vmem>>
    %29 = tpu.memref_slice %arg21[%c0_i32_17] : memref<2x!tpu.dma_semaphore, #tpu.memory_space<semaphore_mem>> -> memref<1x!tpu.dma_semaphore, #tpu.memory_space<semaphore_mem>>
    %30 = tpu.memref_squeeze %29 : memref<1x!tpu.dma_semaphore, #tpu.memory_space<semaphore_mem>> -> memref<!tpu.dma_semaphore, #tpu.memory_space<semaphore_mem>>
    tpu.wait_dma2 semaphore(%30 : memref<!tpu.dma_semaphore, #tpu.memory_space<semaphore_mem>>) src(%27 : memref<1x32xf32, #tpu.memory_space<any>>) dst(%28 : memref<1x32xf32, #tpu.memory_space<vmem>>)
    %c1_i32_21 = arith.constant 1 : i32
    %31 = arith.addi %0, %c1_i32_21 : i32
    %32 = arith.index_cast %31 : i32 to index
    %33 = memref.load %arg1[%32] : memref<2xi32, #tpu.memory_space<smem>>
    %c1_i32_22 = arith.constant 1 : i32
    %c0_i32_23 = arith.constant 0 : i32
    %34 = tpu.memref_slice %arg4[%33, %c0_i32_23] : memref<10x32xf32, #tpu.memory_space<any>> -> memref<1x32xf32, #tpu.memory_space<any>>
    %c1_i32_24 = arith.constant 1 : i32
    %c0_i32_25 = arith.constant 0 : i32
    %35 = tpu.memref_slice %arg20[%c1_i32_24, %c0_i32_25] : memref<2x32xf32, #tpu.memory_space<vmem>> -> memref<1x32xf32, #tpu.memory_space<vmem>>
    %36 = tpu.memref_slice %arg21[%c1_i32_22] : memref<2x!tpu.dma_semaphore, #tpu.memory_space<semaphore_mem>> -> memref<1x!tpu.dma_semaphore, #tpu.memory_space<semaphore_mem>>
    %37 = tpu.memref_squeeze %36 : memref<1x!tpu.dma_semaphore, #tpu.memory_space<semaphore_mem>> -> memref<!tpu.dma_semaphore, #tpu.memory_space<semaphore_mem>>
    tpu.wait_dma2 semaphore(%37 : memref<!tpu.dma_semaphore, #tpu.memory_space<semaphore_mem>>) src(%34 : memref<1x32xf32, #tpu.memory_space<any>>) dst(%35 : memref<1x32xf32, #tpu.memory_space<vmem>>)
    %c0_26 = arith.constant 0 : index
    %c0_27 = arith.constant 0 : index
    %38 = vector.load %arg20[%c0_26, %c0_27] : memref<2x32xf32, #tpu.memory_space<vmem>>, vector<2x32xf32>
    %39 = arith.addf %23, %38 : vector<2x32xf32>
    %40 = math.tanh %39 : vector<2x32xf32>
    %c0_28 = arith.constant 0 : index
    %c0_29 = arith.constant 0 : index
    %41 = vector.load %arg7[%c0_28, %c0_29] : memref<1x32xf32, #tpu.memory_space<vmem>>, vector<1x32xf32>
    %42 = vector.shape_cast %41 : vector<1x32xf32> to vector<1x1x32xf32>
    %43 = vector.broadcast %42 : vector<1x1x32xf32> to vector<2x8x32xf32>
    %44 = arith.mulf %16, %43 : vector<2x8x32xf32>
    %cst_30 = arith.constant dense<0.000000e+00> : vector<2x8xf32>
    %45 = vector.multi_reduction <add>, %44, %cst_30 [2] : vector<2x8x32xf32> to vector<2x8xf32>
    %46 = vector.broadcast %41 : vector<1x32xf32> to vector<2x32xf32>
    %47 = arith.mulf %40, %46 : vector<2x32xf32>
    %cst_31 = arith.constant dense<0.000000e+00> : vector<2xf32>
    %48 = vector.multi_reduction <add>, %47, %cst_31 [1] : vector<2x32xf32> to vector<2xf32>
    %49 = vector.shape_cast %48 : vector<2xf32> to vector<2x1xf32>
    %50 = vector.broadcast %49 : vector<2x1xf32> to vector<2x8xf32>
    %51 = arith.addf %45, %50 : vector<2x8xf32>
    %c0_32 = arith.constant 0 : index
    %c0_33 = arith.constant 0 : index
    %52 = memref.load %arg8[%c0_32, %c0_33] : memref<1x1xf32, #tpu.memory_space<smem>>
    %53 = vector.broadcast %52 : f32 to vector<2x8xf32>
    %54 = arith.addf %51, %53 : vector<2x8xf32>
    %cst_34 = arith.constant dense<0xFF800000> : vector<2xf32>
    %55 = vector.multi_reduction <maximumf>, %54, %cst_34 [1] : vector<2x8xf32> to vector<2xf32>
    %56 = vector.shape_cast %55 : vector<2xf32> to vector<2x1xf32>
    %57 = vector.broadcast %56 : vector<2x1xf32> to vector<2x8xf32>
    %58 = arith.subf %54, %57 : vector<2x8xf32>
    %59 = math.exp %58 : vector<2x8xf32>
    %cst_35 = arith.constant dense<0.000000e+00> : vector<2xf32>
    %60 = vector.multi_reduction <add>, %59, %cst_35 [1] : vector<2x8xf32> to vector<2xf32>
    %61 = vector.shape_cast %60 : vector<2xf32> to vector<2x1xf32>
    %62 = tpu.reciprocal %61 {approx = true} : vector<2x1xf32> -> vector<2x1xf32>
    %63 = vector.broadcast %62 : vector<2x1xf32> to vector<2x8xf32>
    %64 = arith.mulf %59, %63 : vector<2x8xf32>
    %c0_36 = arith.constant 0 : index
    %c0_37 = arith.constant 0 : index
    %65 = vector.load %arg19[%c0_36, %c0_37] : memref<2x8xf32, #tpu.memory_space<vmem>>, vector<2x8xf32>
    tpu.vector_store %arg19[%c0_36, %c0_37], %64 {strides = array<i32>} : memref<2x8xf32, #tpu.memory_space<vmem>>, vector<2x8xf32>,
    %66 = vector.shape_cast %64 : vector<2x8xf32> to vector<2x8x1xf32>
    %67 = vector.broadcast %66 : vector<2x8x1xf32> to vector<2x8x32xf32>
    %68 = arith.mulf %67, %16 : vector<2x8x32xf32>
    %cst_38 = arith.constant dense<0.000000e+00> : vector<2x32xf32>
    %69 = vector.multi_reduction <add>, %68, %cst_38 [1] : vector<2x8x32xf32> to vector<2x32xf32>
    %70 = arith.truncf %69 : vector<2x32xf32> to vector<2x32xbf16>
    %c0_39 = arith.constant 0 : index
    %c0_40 = arith.constant 0 : index
    %71 = vector.load %arg9[%c0_39, %c0_40] : memref<32x32xbf16, #tpu.memory_space<vmem>>, vector<32x32xbf16>
    %cst_41 = arith.constant dense<0.000000e+00> : vector<2x32xf32>
    %72 = tpu.matmul %70, %71, %cst_41 {dimension_numbers = #tpu.dot_dimension_numbers<[1], [0], [0], [1], [0, 0, 1, 1], [], []>} : vector<2x32xbf16>, vector<32x32xbf16>, vector<2x32xf32> -> vector<2x32xf32>
    %c0_42 = arith.constant 0 : index
    %c0_43 = arith.constant 0 : index
    %73 = vector.load %arg10[%c0_42, %c0_43] : memref<1x32xf32, #tpu.memory_space<vmem>>, vector<1x32xf32>
    %74 = vector.broadcast %73 : vector<1x32xf32> to vector<2x32xf32>
    %75 = arith.addf %72, %74 : vector<2x32xf32>
    %cst_44 = arith.constant 0.000000e+00 : f32
    %76 = vector.broadcast %cst_44 : f32 to vector<2x32xf32>
    %77 = arith.cmpf ogt, %75, %76 : vector<2x32xf32>
    %cst_45 = arith.constant 0.00999999977 : f32
    %78 = vector.broadcast %cst_45 : f32 to vector<2x32xf32>
    %79 = arith.mulf %78, %75 : vector<2x32xf32>
    %80 = arith.select %77, %75, %79 : vector<2x32xi1>, vector<2x32xf32>
    %81 = arith.truncf %80 : vector<2x32xf32> to vector<2x32xbf16>
    %82 = arith.truncf %17 : vector<2x32xf32> to vector<2x32xbf16>
    %c0_46 = arith.constant 0 : index
    %c0_47 = arith.constant 0 : index
    %c0_48 = arith.constant 0 : index
    %83 = vector.load %arg11[%c0_46, %c0_47, %c0_48] : memref<3x32x32xbf16, #tpu.memory_space<vmem>>, vector<1x32x32xbf16>
    %84 = vector.shape_cast %83 : vector<1x32x32xbf16> to vector<32x32xbf16>
    %cst_49 = arith.constant dense<0.000000e+00> : vector<2x32xf32>
    %85 = tpu.matmul %81, %84, %cst_49 {dimension_numbers = #tpu.dot_dimension_numbers<[1], [0], [0], [1], [0, 0, 1, 1], [], []>} : vector<2x32xbf16>, vector<32x32xbf16>, vector<2x32xf32> -> vector<2x32xf32>
    %c0_50 = arith.constant 0 : index
    %c0_51 = arith.constant 0 : index
    %c0_52 = arith.constant 0 : index
    %86 = vector.load %arg12[%c0_50, %c0_51, %c0_52] : memref<3x1x32xf32, #tpu.memory_space<vmem>>, vector<1x1x32xf32>
    %87 = vector.shape_cast %86 : vector<1x1x32xf32> to vector<1x32xf32>
    %88 = vector.broadcast %87 : vector<1x32xf32> to vector<2x32xf32>
    %89 = arith.addf %85, %88 : vector<2x32xf32>
    %c0_53 = arith.constant 0 : index
    %c0_54 = arith.constant 0 : index
    %c0_55 = arith.constant 0 : index
    %90 = vector.load %arg13[%c0_53, %c0_54, %c0_55] : memref<3x32x32xbf16, #tpu.memory_space<vmem>>, vector<1x32x32xbf16>
    %91 = vector.shape_cast %90 : vector<1x32x32xbf16> to vector<32x32xbf16>
    %cst_56 = arith.constant dense<0.000000e+00> : vector<2x32xf32>
    %92 = tpu.matmul %82, %91, %cst_56 {dimension_numbers = #tpu.dot_dimension_numbers<[1], [0], [0], [1], [0, 0, 1, 1], [], []>} : vector<2x32xbf16>, vector<32x32xbf16>, vector<2x32xf32> -> vector<2x32xf32>
    %c0_57 = arith.constant 0 : index
    %c0_58 = arith.constant 0 : index
    %c0_59 = arith.constant 0 : index
    %93 = vector.load %arg14[%c0_57, %c0_58, %c0_59] : memref<3x1x32xf32, #tpu.memory_space<vmem>>, vector<1x1x32xf32>
    %94 = vector.shape_cast %93 : vector<1x1x32xf32> to vector<1x32xf32>
    %95 = vector.broadcast %94 : vector<1x32xf32> to vector<2x32xf32>
    %96 = arith.addf %92, %95 : vector<2x32xf32>
    %c1 = arith.constant 1 : index
    %c0_60 = arith.constant 0 : index
    %c0_61 = arith.constant 0 : index
    %97 = vector.load %arg11[%c1, %c0_60, %c0_61] : memref<3x32x32xbf16, #tpu.memory_space<vmem>>, vector<1x32x32xbf16>
    %98 = vector.shape_cast %97 : vector<1x32x32xbf16> to vector<32x32xbf16>
    %cst_62 = arith.constant dense<0.000000e+00> : vector<2x32xf32>
    %99 = tpu.matmul %81, %98, %cst_62 {dimension_numbers = #tpu.dot_dimension_numbers<[1], [0], [0], [1], [0, 0, 1, 1], [], []>} : vector<2x32xbf16>, vector<32x32xbf16>, vector<2x32xf32> -> vector<2x32xf32>
    %c1_63 = arith.constant 1 : index
    %c0_64 = arith.constant 0 : index
    %c0_65 = arith.constant 0 : index
    %100 = vector.load %arg12[%c1_63, %c0_64, %c0_65] : memref<3x1x32xf32, #tpu.memory_space<vmem>>, vector<1x1x32xf32>
    %101 = vector.shape_cast %100 : vector<1x1x32xf32> to vector<1x32xf32>
    %102 = vector.broadcast %101 : vector<1x32xf32> to vector<2x32xf32>
    %103 = arith.addf %99, %102 : vector<2x32xf32>
    %c1_66 = arith.constant 1 : index
    %c0_67 = arith.constant 0 : index
    %c0_68 = arith.constant 0 : index
    %104 = vector.load %arg13[%c1_66, %c0_67, %c0_68] : memref<3x32x32xbf16, #tpu.memory_space<vmem>>, vector<1x32x32xbf16>
    %105 = vector.shape_cast %104 : vector<1x32x32xbf16> to vector<32x32xbf16>
    %cst_69 = arith.constant dense<0.000000e+00> : vector<2x32xf32>
    %106 = tpu.matmul %82, %105, %cst_69 {dimension_numbers = #tpu.dot_dimension_numbers<[1], [0], [0], [1], [0, 0, 1, 1], [], []>} : vector<2x32xbf16>, vector<32x32xbf16>, vector<2x32xf32> -> vector<2x32xf32>
    %c1_70 = arith.constant 1 : index
    %c0_71 = arith.constant 0 : index
    %c0_72 = arith.constant 0 : index
    %107 = vector.load %arg14[%c1_70, %c0_71, %c0_72] : memref<3x1x32xf32, #tpu.memory_space<vmem>>, vector<1x1x32xf32>
    %108 = vector.shape_cast %107 : vector<1x1x32xf32> to vector<1x32xf32>
    %109 = vector.broadcast %108 : vector<1x32xf32> to vector<2x32xf32>
    %110 = arith.addf %106, %109 : vector<2x32xf32>
    %c2 = arith.constant 2 : index
    %c0_73 = arith.constant 0 : index
    %c0_74 = arith.constant 0 : index
    %111 = vector.load %arg11[%c2, %c0_73, %c0_74] : memref<3x32x32xbf16, #tpu.memory_space<vmem>>, vector<1x32x32xbf16>
    %112 = vector.shape_cast %111 : vector<1x32x32xbf16> to vector<32x32xbf16>
    %cst_75 = arith.constant dense<0.000000e+00> : vector<2x32xf32>
    %113 = tpu.matmul %81, %112, %cst_75 {dimension_numbers = #tpu.dot_dimension_numbers<[1], [0], [0], [1], [0, 0, 1, 1], [], []>} : vector<2x32xbf16>, vector<32x32xbf16>, vector<2x32xf32> -> vector<2x32xf32>
    %c2_76 = arith.constant 2 : index
    %c0_77 = arith.constant 0 : index
    %c0_78 = arith.constant 0 : index
    %114 = vector.load %arg12[%c2_76, %c0_77, %c0_78] : memref<3x1x32xf32, #tpu.memory_space<vmem>>, vector<1x1x32xf32>
    %115 = vector.shape_cast %114 : vector<1x1x32xf32> to vector<1x32xf32>
    %116 = vector.broadcast %115 : vector<1x32xf32> to vector<2x32xf32>
    %117 = arith.addf %113, %116 : vector<2x32xf32>
    %c2_79 = arith.constant 2 : index
    %c0_80 = arith.constant 0 : index
    %c0_81 = arith.constant 0 : index
    %118 = vector.load %arg13[%c2_79, %c0_80, %c0_81] : memref<3x32x32xbf16, #tpu.memory_space<vmem>>, vector<1x32x32xbf16>
    %119 = vector.shape_cast %118 : vector<1x32x32xbf16> to vector<32x32xbf16>
    %cst_82 = arith.constant dense<0.000000e+00> : vector<2x32xf32>
    %120 = tpu.matmul %82, %119, %cst_82 {dimension_numbers = #tpu.dot_dimension_numbers<[1], [0], [0], [1], [0, 0, 1, 1], [], []>} : vector<2x32xbf16>, vector<32x32xbf16>, vector<2x32xf32> -> vector<2x32xf32>
    %c2_83 = arith.constant 2 : index
    %c0_84 = arith.constant 0 : index
    %c0_85 = arith.constant 0 : index
    %121 = vector.load %arg14[%c2_83, %c0_84, %c0_85] : memref<3x1x32xf32, #tpu.memory_space<vmem>>, vector<1x1x32xf32>
    %122 = vector.shape_cast %121 : vector<1x1x32xf32> to vector<1x32xf32>
    %123 = vector.broadcast %122 : vector<1x32xf32> to vector<2x32xf32>
    %124 = arith.addf %120, %123 : vector<2x32xf32>
    %125 = arith.addf %89, %96 : vector<2x32xf32>
    %126 = arith.negf %125 : vector<2x32xf32>
    %127 = math.exp %126 : vector<2x32xf32>
    %cst_86 = arith.constant 1.000000e+00 : f32
    %128 = vector.broadcast %cst_86 : f32 to vector<2x32xf32>
    %129 = arith.addf %128, %127 : vector<2x32xf32>
    %130 = arith.divf %128, %129 : vector<2x32xf32>
    %131 = arith.addf %103, %110 : vector<2x32xf32>
    %132 = arith.negf %131 : vector<2x32xf32>
    %133 = math.exp %132 : vector<2x32xf32>
    %cst_87 = arith.constant 1.000000e+00 : f32
    %134 = vector.broadcast %cst_87 : f32 to vector<2x32xf32>
    %135 = arith.addf %134, %133 : vector<2x32xf32>
    %136 = arith.divf %134, %135 : vector<2x32xf32>
    %137 = arith.mulf %130, %124 : vector<2x32xf32>
    %138 = arith.addf %117, %137 : vector<2x32xf32>
    %139 = math.tanh %138 : vector<2x32xf32>
    %cst_88 = arith.constant 1.000000e+00 : f32
    %140 = vector.broadcast %cst_88 : f32 to vector<2x32xf32>
    %141 = arith.subf %140, %136 : vector<2x32xf32>
    %142 = arith.mulf %141, %139 : vector<2x32xf32>
    %143 = arith.mulf %136, %17 : vector<2x32xf32>
    %144 = arith.addf %142, %143 : vector<2x32xf32>
    %c0_89 = arith.constant 0 : index
    %c0_90 = arith.constant 0 : index
    %145 = vector.load %arg18[%c0_89, %c0_90] : memref<2x32xf32, #tpu.memory_space<vmem>>, vector<2x32xf32>
    tpu.vector_store %arg18[%c0_89, %c0_90], %144 {strides = array<i32>} : memref<2x32xf32, #tpu.memory_space<vmem>>, vector<2x32xf32>,
    %146 = arith.truncf %144 : vector<2x32xf32> to vector<2x32xbf16>
    %c0_91 = arith.constant 0 : index
    %c0_92 = arith.constant 0 : index
    %147 = vector.load %arg15[%c0_91, %c0_92] : memref<32x10xbf16, #tpu.memory_space<vmem>>, vector<32x10xbf16>
    %cst_93 = arith.constant dense<0.000000e+00> : vector<2x10xf32>
    %148 = tpu.matmul %146, %147, %cst_93 {dimension_numbers = #tpu.dot_dimension_numbers<[1], [0], [0], [1], [0, 0, 1, 1], [], []>} : vector<2x32xbf16>, vector<32x10xbf16>, vector<2x10xf32> -> vector<2x10xf32>
    %c0_94 = arith.constant 0 : index
    %c0_95 = arith.constant 0 : index
    %149 = vector.load %arg16[%c0_94, %c0_95] : memref<1x10xf32, #tpu.memory_space<vmem>>, vector<1x10xf32>
    %150 = vector.broadcast %149 : vector<1x10xf32> to vector<2x10xf32>
    %151 = arith.addf %148, %150 : vector<2x10xf32>
    %cst_96 = arith.constant dense<0xFF800000> : vector<2xf32>
    %152 = vector.multi_reduction <maximumf>, %151, %cst_96 [1] : vector<2x10xf32> to vector<2xf32>
    %153 = vector.shape_cast %152 : vector<2xf32> to vector<2x1xf32>
    %154 = vector.broadcast %153 : vector<2x1xf32> to vector<2x10xf32>
    %155 = arith.subf %151, %154 : vector<2x10xf32>
    %156 = math.exp %155 : vector<2x10xf32>
    %cst_97 = arith.constant dense<0.000000e+00> : vector<2xf32>
    %157 = vector.multi_reduction <add>, %156, %cst_97 [1] : vector<2x10xf32> to vector<2xf32>
    %158 = vector.shape_cast %157 : vector<2xf32> to vector<2x1xf32>
    %159 = math.log %158 : vector<2x1xf32>
    %160 = arith.addf %153, %159 : vector<2x1xf32>
    %161 = vector.broadcast %160 : vector<2x1xf32> to vector<2x10xf32>
    %162 = arith.subf %151, %161 : vector<2x10xf32>
    %c0_98 = arith.constant 0 : index
    %c0_99 = arith.constant 0 : index
    %163 = vector.load %arg17[%c0_98, %c0_99] : memref<2x10xf32, #tpu.memory_space<vmem>>, vector<2x10xf32>
    tpu.vector_store %arg17[%c0_98, %c0_99], %162 {strides = array<i32>} : memref<2x10xf32, #tpu.memory_space<vmem>>, vector<2x10xf32>,
    return
  }
  func.func @transform_0(%arg0: i32, %arg1: memref<2xi32, #tpu.memory_space<smem>>) -> (i32, i32, i32) {
    %c0_i32 = arith.constant 0 : i32
    %c0_i32_0 = arith.constant 0 : i32
    %c0_i32_1 = arith.constant 0 : i32
    return %arg0, %c0_i32, %c0_i32_0 : i32, i32, i32
  }
  func.func @transform_1(%arg0: i32, %arg1: memref<2xi32, #tpu.memory_space<smem>>) -> (i32, i32) {
    %c0_i32 = arith.constant 0 : i32
    %c0_i32_0 = arith.constant 0 : i32
    return %arg0, %c0_i32 : i32, i32
  }
  func.func @transform_3(%arg0: i32, %arg1: memref<2xi32, #tpu.memory_space<smem>>) -> (i32, i32) {
    %c0_i32 = arith.constant 0 : i32
    %c0_i32_0 = arith.constant 0 : i32
    %c0_i32_1 = arith.constant 0 : i32
    return %c0_i32, %c0_i32_0 : i32, i32
  }
  func.func @transform_4(%arg0: i32, %arg1: memref<2xi32, #tpu.memory_space<smem>>) -> (i32, i32) {
    %c0_i32 = arith.constant 0 : i32
    %c0_i32_0 = arith.constant 0 : i32
    %c0_i32_1 = arith.constant 0 : i32
    return %c0_i32, %c0_i32_0 : i32, i32
  }
  func.func @transform_5(%arg0: i32, %arg1: memref<2xi32, #tpu.memory_space<smem>>) -> (i32, i32) {
    %c0_i32 = arith.constant 0 : i32
    %c0_i32_0 = arith.constant 0 : i32
    %c0_i32_1 = arith.constant 0 : i32
    return %c0_i32, %c0_i32_0 : i32, i32
  }
  func.func @transform_6(%arg0: i32, %arg1: memref<2xi32, #tpu.memory_space<smem>>) -> (i32, i32) {
    %c0_i32 = arith.constant 0 : i32
    %c0_i32_0 = arith.constant 0 : i32
    %c0_i32_1 = arith.constant 0 : i32
    return %c0_i32, %c0_i32_0 : i32, i32
  }
  func.func @transform_7(%arg0: i32, %arg1: memref<2xi32, #tpu.memory_space<smem>>) -> (i32, i32) {
    %c0_i32 = arith.constant 0 : i32
    %c0_i32_0 = arith.constant 0 : i32
    %c0_i32_1 = arith.constant 0 : i32
    return %c0_i32, %c0_i32_0 : i32, i32
  }
  func.func @transform_8(%arg0: i32, %arg1: memref<2xi32, #tpu.memory_space<smem>>) -> (i32, i32) {
    %c0_i32 = arith.constant 0 : i32
    %c0_i32_0 = arith.constant 0 : i32
    %c0_i32_1 = arith.constant 0 : i32
    return %c0_i32, %c0_i32_0 : i32, i32
  }
  func.func @transform_9(%arg0: i32, %arg1: memref<2xi32, #tpu.memory_space<smem>>) -> (i32, i32, i32) {
    %c0_i32 = arith.constant 0 : i32
    %c0_i32_0 = arith.constant 0 : i32
    %c0_i32_1 = arith.constant 0 : i32
    %c0_i32_2 = arith.constant 0 : i32
    return %c0_i32, %c0_i32_0, %c0_i32_1 : i32, i32, i32
  }
  func.func @transform_10(%arg0: i32, %arg1: memref<2xi32, #tpu.memory_space<smem>>) -> (i32, i32, i32) {
    %c0_i32 = arith.constant 0 : i32
    %c0_i32_0 = arith.constant 0 : i32
    %c0_i32_1 = arith.constant 0 : i32
    %c0_i32_2 = arith.constant 0 : i32
    return %c0_i32, %c0_i32_0, %c0_i32_1 : i32, i32, i32
  }
  func.func @transform_11(%arg0: i32, %arg1: memref<2xi32, #tpu.memory_space<smem>>) -> (i32, i32, i32) {
    %c0_i32 = arith.constant 0 : i32
    %c0_i32_0 = arith.constant 0 : i32
    %c0_i32_1 = arith.constant 0 : i32
    %c0_i32_2 = arith.constant 0 : i32
    return %c0_i32, %c0_i32_0, %c0_i32_1 : i32, i32, i32
  }
  func.func @transform_12(%arg0: i32, %arg1: memref<2xi32, #tpu.memory_space<smem>>) -> (i32, i32, i32) {
    %c0_i32 = arith.constant 0 : i32
    %c0_i32_0 = arith.constant 0 : i32
    %c0_i32_1 = arith.constant 0 : i32
    %c0_i32_2 = arith.constant 0 : i32
    return %c0_i32, %c0_i32_0, %c0_i32_1 : i32, i32, i32
  }
  func.func @transform_13(%arg0: i32, %arg1: memref<2xi32, #tpu.memory_space<smem>>) -> (i32, i32) {
    %c0_i32 = arith.constant 0 : i32
    %c0_i32_0 = arith.constant 0 : i32
    %c0_i32_1 = arith.constant 0 : i32
    return %c0_i32, %c0_i32_0 : i32, i32
  }
  func.func @transform_14(%arg0: i32, %arg1: memref<2xi32, #tpu.memory_space<smem>>) -> (i32, i32) {
    %c0_i32 = arith.constant 0 : i32
    %c0_i32_0 = arith.constant 0 : i32
    %c0_i32_1 = arith.constant 0 : i32
    return %c0_i32, %c0_i32_0 : i32, i32
  }
  func.func @transform_15(%arg0: i32, %arg1: memref<2xi32, #tpu.memory_space<smem>>) -> (i32, i32) {
    %c0_i32 = arith.constant 0 : i32
    %c0_i32_0 = arith.constant 0 : i32
    return %arg0, %c0_i32 : i32, i32
  }
  func.func @transform_16(%arg0: i32, %arg1: memref<2xi32, #tpu.memory_space<smem>>) -> (i32, i32) {
    %c0_i32 = arith.constant 0 : i32
    %c0_i32_0 = arith.constant 0 : i32
    return %arg0, %c0_i32 : i32, i32
  }
  func.func @transform_17(%arg0: i32, %arg1: memref<2xi32, #tpu.memory_space<smem>>) -> (i32, i32) {
    %c0_i32 = arith.constant 0 : i32
    %c0_i32_0 = arith.constant 0 : i32
    return %arg0, %c0_i32 : i32, i32
  }
}

</mosaic_0001>

<llo_original>
// kernel: tpu_custom_call.1
$region0: #{tpu_custom_call.1}
  #allocation0 [shape = 'u32[]', space=smem, size = 0x4, offset = 0x4, fixed_abs, tag = 'smem constant byte address 0x4 - core index']
  #allocation1 [shape = 'u32[72,128]{1,0:T(1,128)}', space=vmem, size = 0x9000, scoped, tag = 'internal scratch']
  #allocation2 [shape = 'f32[2,32]{1,0:T(2,128)}', space=vmem, size = 0x400, scoped, tag = 'scratch operand']
  #allocation3 [shape = 's32[2]{0}', space=sflag, size = 0x8, scoped, tag = 'scratch operand']
  #allocation4 [shape = 's32[1]{0}', space=sflag, size = 0x4, scoped, tag = 'scoped memory for tpu_custom_call.1']
  #allocation5 [shape = 'u8[512]{0}', space=smem, size = 0x200, scoped, tag = 'prefetched SMEM operand 0']
  #allocation6 [shape = 'f32[1,1]{1,0:T(1,128)S(6)}', space=smem, size = 0x200, scoped, tag = 'scoped memory for tpu_custom_call.1']
  #allocation25 [shape = 's32[]', space=sflag, size = 0x4, offset = 0, fixed_abs, tag = 'sflag constant byte address 0x0 - dummy sync flag']
  #allocation26 [shape = 's32[]', space=sflag, size = 0x4, offset = 0, fixed_abs, tag = 'sflag constant byte address 0x0 - dummy sync flag']
  %s0 = inlined_call_operand.hbm [shape: s32[2], index: 0, kind: input, shape index: {}]
  %s1 = inlined_call_operand.vmem [shape: bf16[2,8,32], index: 1, kind: input, shape index: {}]
  %s2 = inlined_call_operand.hbm [shape: f32[2,32], index: 2, kind: input, shape index: {}]
  %s3 = inlined_call_operand.vmem [shape: f32[10,32], index: 3, kind: input, shape index: {}]
  %s4 = inlined_call_operand.hbm [shape: bf16[32,32], index: 4, kind: input, shape index: {}]
  %s5 = inlined_call_operand.hbm [shape: f32[1,32], index: 5, kind: input, shape index: {}]
  %s6 = inlined_call_operand.hbm [shape: f32[1,32], index: 6, kind: input, shape index: {}]
  %s7 = inlined_call_operand.<no memory space> [shape: f32[1,1], index: 7, kind: input, shape index: {}]
  %s8 = inlined_call_operand.hbm [shape: bf16[32,32], index: 8, kind: input, shape index: {}]
  %s9 = inlined_call_operand.hbm [shape: f32[1,32], index: 9, kind: input, shape index: {}]
  %s10 = inlined_call_operand.hbm [shape: bf16[3,32,32], index: 10, kind: input, shape index: {}]
  %s11 = inlined_call_operand.vmem [shape: f32[3,1,32], index: 11, kind: input, shape index: {}]
  %s12 = inlined_call_operand.hbm [shape: bf16[3,32,32], index: 12, kind: input, shape index: {}]
  %s13 = inlined_call_operand.vmem [shape: f32[3,1,32], index: 13, kind: input, shape index: {}]
  %s14 = inlined_call_operand.vmem [shape: bf16[32,10], index: 14, kind: input, shape index: {}]
  %s15 = inlined_call_operand.vmem [shape: f32[1,10], index: 15, kind: input, shape index: {}]
  %s16 = inlined_call_operand.hbm [shape: f32[2,10], index: 16, kind: output, shape index: {0}]
  %s17 = inlined_call_operand.hbm [shape: f32[2,32], index: 17, kind: output, shape index: {1}]
  %s18 = inlined_call_operand.hbm [shape: f32[2,8], index: 18, kind: output, shape index: {2}]
  %19 = xla_tuple %s16, %s17, %s18
  %s20 = sld [smem:[#allocation0]]
  $region174: #{tpu_custom_call.1} parent=0
    _
  %s22 = ssub.s32 1, %s20
  %s23 = scalar_select 0, %s22, %s20
  %s25 = sshll.u32 %s0, 4
  %s26 = int_to_ptr.hbm [resolvable:$true] %s25
  %28 = dma.hbm_to_smem %s26, 16, [#allocation5], [#allocation4]
  %29 = sst [smem:[#allocation6]] %s7
  %31 = dma.done [#allocation4], 16
  %32 = sfence
  $region1: #{tpu_custom_call.1} parent=0
    #allocation7 [shape = 'u8[1024]{0}', space=vmem, size = 0x400, scoped, tag = 'input window, operand 2, single buffered']
    #allocation8 [shape = 's32[1]{0}', space=sflag, size = 0x4, scoped, tag = 'scoped memory for tpu_custom_call.1']
    #allocation9 [shape = 's32[1]{0}', space=sflag, size = 0x4, scoped, tag = 'scoped memory for tpu_custom_call.1']
    #allocation10 [shape = 'u8[8192]{0}', space=vmem, size = 0x2000, scoped, tag = 'input window, operand 4, single buffered']
    #allocation11 [shape = 's32[1]{0}', space=sflag, size = 0x4, scoped, tag = 'scoped memory for tpu_custom_call.1']
    #allocation12 [shape = 'u8[512]{0}', space=vmem, size = 0x400, scoped, tag = 'input window, operand 5, single buffered']
    #allocation13 [shape = 'u8[512]{0}', space=vmem, size = 0x400, scoped, tag = 'input window, operand 6, single buffered']
    #allocation14 [shape = 's32[1]{0}', space=sflag, size = 0x4, scoped, tag = 'scoped memory for tpu_custom_call.1']
    #allocation15 [shape = 'u8[8192]{0}', space=vmem, size = 0x2000, scoped, tag = 'input window, operand 8, single buffered']
    #allocation16 [shape = 'u8[512]{0}', space=vmem, size = 0x400, scoped, tag = 'input window, operand 9, single buffered']
    #allocation17 [shape = 's32[1]{0}', space=sflag, size = 0x4, scoped, tag = 'scoped memory for tpu_custom_call.1']
    #allocation18 [shape = 'u8[24576]{0}', space=vmem, size = 0x6000, scoped, tag = 'input window, operand 10, single buffered']
    #allocation19 [shape = 'u8[24576]{0}', space=vmem, size = 0x6000, scoped, tag = 'input window, operand 12, single buffered']
    #allocation20 [shape = 's32[1]{0}', space=sflag, size = 0x4, scoped, tag = 'scoped memory for tpu_custom_call.1']
    #allocation21 [shape = 'u8[1024]{0}', space=vmem, size = 0x400, scoped, tag = 'output window, operand 0, single buffered']
    #allocation22 [shape = 'u8[1024]{0}', space=vmem, size = 0x400, scoped, tag = 'output window, operand 1, single buffered']
    #allocation23 [shape = 's32[1]{0}', space=sflag, size = 0x4, scoped, tag = 'scoped memory for tpu_custom_call.1']
    #allocation24 [shape = 'u8[1024]{0}', space=vmem, size = 0x400, scoped, tag = 'output window, operand 2, single buffered']
    %33 = vsyncpa [#allocation8], 0
    %34 = vsyncpa [#allocation11], 0
    %35 = vsyncpa [#allocation14], 0
    %36 = vsyncpa [#allocation17], 0
    %37 = vsyncpa [#allocation20], 0
    %38 = vsyncpa [#allocation9], 0
    %39 = vsyncpa [#allocation23], 0
    // Predicated region
    $region2: #{tpu_custom_call.1} parent=1 // pred_check
      _
    $region3: #{tpu_custom_call.1} parent=1 // pred_check_branch
      %41 = sbr.rel (0) target = $region5
    $region4: #{tpu_custom_call.1} parent=1 // pred_region
      _
    $region5: #{tpu_custom_call.1} parent=1 // pred_fallthru
      _
    // Predicated region
    $region6: #{tpu_custom_call.1} parent=1 // pred_check
      _
    $region7: #{tpu_custom_call.1} parent=1 // pred_check_branch
      %43 = sbr.rel (0) target = $region9
    $region8: #{tpu_custom_call.1} parent=1 // pred_region
      %45 = vsyncadd [#allocation8], 0
      %s47 = sshll.u32 %s2, 4
      %s48 = int_to_ptr.hbm [resolvable:$true] %s47
      %s49 = sshll.u32 [#allocation7], 4
      %s50 = int_to_ptr.vmem [resolvable:$true] %s49
      %52 = dma.hbm_to_vmem [thread:$0]  %s48, 32, %s50, [#allocation8]
    $region9: #{tpu_custom_call.1} parent=1 // pred_fallthru
      _
    // Predicated region
    $region10: #{tpu_custom_call.1} parent=1 // pred_check
      _
    $region11: #{tpu_custom_call.1} parent=1 // pred_check_branch
      %54 = sbr.rel (0) target = $region13
    $region12: #{tpu_custom_call.1} parent=1 // pred_region
      %56 = vsyncadd [#allocation11], 0
      %s57 = sshll.u32 %s4, 4
      %s58 = int_to_ptr.hbm [resolvable:$true] %s57
      %s59 = sshll.u32 [#allocation10], 4
      %s60 = int_to_ptr.vmem [resolvable:$true] %s59
      %65 = dma.hbm_to_vmem [thread:$0]  %s58, 256, %s60, [#allocation11], 64, 64, 4
    $region13: #{tpu_custom_call.1} parent=1 // pred_fallthru
      _
    // Predicated region
    $region14: #{tpu_custom_call.1} parent=1 // pred_check
      _
    $region15: #{tpu_custom_call.1} parent=1 // pred_check_branch
      %67 = sbr.rel (0) target = $region17
    $region16: #{tpu_custom_call.1} parent=1 // pred_region
      %69 = vsyncadd [#allocation11], 0
      %s71 = sshll.u32 %s5, 4
      %s72 = int_to_ptr.hbm [resolvable:$true] %s71
      %s73 = sshll.u32 [#allocation12], 4
      %s74 = int_to_ptr.vmem [resolvable:$true] %s73
      %76 = dma.hbm_to_vmem [thread:$0]  %s72, 16, %s74, [#allocation11]
    $region17: #{tpu_custom_call.1} parent=1 // pred_fallthru
      _
    // Predicated region
    $region18: #{tpu_custom_call.1} parent=1 // pred_check
      _
    $region19: #{tpu_custom_call.1} parent=1 // pred_check_branch
      %78 = sbr.rel (0) target = $region21
    $region20: #{tpu_custom_call.1} parent=1 // pred_region
      %80 = vsyncadd [#allocation14], 0
      %s82 = sshll.u32 %s6, 4
      %s83 = int_to_ptr.hbm [resolvable:$true] %s82
      %s84 = sshll.u32 [#allocation13], 4
      %s85 = int_to_ptr.vmem [resolvable:$true] %s84
      %87 = dma.hbm_to_vmem [thread:$0]  %s83, 16, %s85, [#allocation14]
    $region21: #{tpu_custom_call.1} parent=1 // pred_fallthru
      _
    // Predicated region
    $region22: #{tpu_custom_call.1} parent=1 // pred_check
      _
    $region23: #{tpu_custom_call.1} parent=1 // pred_check_branch
      %89 = sbr.rel (0) target = $region25
    $region24: #{tpu_custom_call.1} parent=1 // pred_region
      _
    $region25: #{tpu_custom_call.1} parent=1 // pred_fallthru
      _
    // Predicated region
    $region26: #{tpu_custom_call.1} parent=1 // pred_check
      _
    $region27: #{tpu_custom_call.1} parent=1 // pred_check_branch
      %91 = sbr.rel (0) target = $region29
    $region28: #{tpu_custom_call.1} parent=1 // pred_region
      %93 = vsyncadd [#allocation14], 0
      %s94 = sshll.u32 %s8, 4
      %s95 = int_to_ptr.hbm [resolvable:$true] %s94
      %s96 = sshll.u32 [#allocation15], 4
      %s97 = int_to_ptr.vmem [resolvable:$true] %s96
      %102 = dma.hbm_to_vmem [thread:$0]  %s95, 256, %s97, [#allocation14], 64, 64, 4
    $region29: #{tpu_custom_call.1} parent=1 // pred_fallthru
      _
    // Predicated region
    $region30: #{tpu_custom_call.1} parent=1 // pred_check
      _
    $region31: #{tpu_custom_call.1} parent=1 // pred_check_branch
      %104 = sbr.rel (0) target = $region33
    $region32: #{tpu_custom_call.1} parent=1 // pred_region
      %106 = vsyncadd [#allocation17], 0
      %s108 = sshll.u32 %s9, 4
      %s109 = int_to_ptr.hbm [resolvable:$true] %s108
      %s110 = sshll.u32 [#allocation16], 4
      %s111 = int_to_ptr.vmem [resolvable:$true] %s110
      %113 = dma.hbm_to_vmem [thread:$0]  %s109, 16, %s111, [#allocation17]
    $region33: #{tpu_custom_call.1} parent=1 // pred_fallthru
      _
    // Predicated region
    $region34: #{tpu_custom_call.1} parent=1 // pred_check
      _
    $region35: #{tpu_custom_call.1} parent=1 // pred_check_branch
      %115 = sbr.rel (0) target = $region37
    $region36: #{tpu_custom_call.1} parent=1 // pred_region
      %117 = vsyncadd [#allocation17], 0
      %s118 = sshll.u32 %s10, 4
      %s119 = int_to_ptr.hbm [resolvable:$true] %s118
      %s120 = sshll.u32 [#allocation18], 4
      %s121 = int_to_ptr.vmem [resolvable:$true] %s120
      %126 = dma.hbm_to_vmem [thread:$0]  %s119, 768, %s121, [#allocation17], 64, 64, 4
    $region37: #{tpu_custom_call.1} parent=1 // pred_fallthru
      _
    // Predicated region
    $region38: #{tpu_custom_call.1} parent=1 // pred_check
      _
    $region39: #{tpu_custom_call.1} parent=1 // pred_check_branch
      %128 = sbr.rel (0) target = $region41
    $region40: #{tpu_custom_call.1} parent=1 // pred_region
      _
    $region41: #{tpu_custom_call.1} parent=1 // pred_fallthru
      _
    // Predicated region
    $region42: #{tpu_custom_call.1} parent=1 // pred_check
      _
    $region43: #{tpu_custom_call.1} parent=1 // pred_check_branch
      %130 = sbr.rel (0) target = $region45
    $region44: #{tpu_custom_call.1} parent=1 // pred_region
      %132 = vsyncadd [#allocation20], 0
      %s133 = sshll.u32 %s12, 4
      %s134 = int_to_ptr.hbm [resolvable:$true] %s133
      %s135 = sshll.u32 [#allocation19], 4
      %s136 = int_to_ptr.vmem [resolvable:$true] %s135
      %141 = dma.hbm_to_vmem [thread:$0]  %s134, 768, %s136, [#allocation20], 64, 64, 4
    $region45: #{tpu_custom_call.1} parent=1 // pred_fallthru
      _
    // Predicated region
    $region46: #{tpu_custom_call.1} parent=1 // pred_check
      _
    $region47: #{tpu_custom_call.1} parent=1 // pred_check_branch
      %143 = sbr.rel (0) target = $region49
    $region48: #{tpu_custom_call.1} parent=1 // pred_region
      _
    $region49: #{tpu_custom_call.1} parent=1 // pred_fallthru
      _
    // Predicated region
    $region50: #{tpu_custom_call.1} parent=1 // pred_check
      _
    $region51: #{tpu_custom_call.1} parent=1 // pred_check_branch
      %145 = sbr.rel (0) target = $region53
    $region52: #{tpu_custom_call.1} parent=1 // pred_region
      _
    $region53: #{tpu_custom_call.1} parent=1 // pred_fallthru
      _
    // Predicated region
    $region54: #{tpu_custom_call.1} parent=1 // pred_check
      _
    $region55: #{tpu_custom_call.1} parent=1 // pred_check_branch
      %147 = sbr.rel (0) target = $region57
    $region56: #{tpu_custom_call.1} parent=1 // pred_region
      _
    $region57: #{tpu_custom_call.1} parent=1 // pred_fallthru
      _
    // Predicated region
    $region58: #{tpu_custom_call.1} parent=1 // pred_check
      _
    $region59: #{tpu_custom_call.1} parent=1 // pred_check_branch
      %149 = sbr.rel (0) target = $region61
    $region60: #{tpu_custom_call.1} parent=1 // pred_region
      %151 = dma.done [#allocation8], 32
    $region61: #{tpu_custom_call.1} parent=1 // pred_fallthru
      _
    // Predicated region
    $region62: #{tpu_custom_call.1} parent=1 // pred_check
      _
    $region63: #{tpu_custom_call.1} parent=1 // pred_check_branch
      %153 = sbr.rel (0) target = $region65
    $region64: #{tpu_custom_call.1} parent=1 // pred_region
      %155 = dma.done [#allocation11], 256
    $region65: #{tpu_custom_call.1} parent=1 // pred_fallthru
      _
    // Predicated region
    $region66: #{tpu_custom_call.1} parent=1 // pred_check
      _
    $region67: #{tpu_custom_call.1} parent=1 // pred_check_branch
      %157 = sbr.rel (0) target = $region69
    $region68: #{tpu_custom_call.1} parent=1 // pred_region
      %159 = dma.done [#allocation11], 16
    $region69: #{tpu_custom_call.1} parent=1 // pred_fallthru
      _
    // Predicated region
    $region70: #{tpu_custom_call.1} parent=1 // pred_check
      _
    $region71: #{tpu_custom_call.1} parent=1 // pred_check_branch
      %161 = sbr.rel (0) target = $region73
    $region72: #{tpu_custom_call.1} parent=1 // pred_region
      %163 = dma.done [#allocation14], 16
    $region73: #{tpu_custom_call.1} parent=1 // pred_fallthru
      _
    // Predicated region
    $region74: #{tpu_custom_call.1} parent=1 // pred_check
      _
    $region75: #{tpu_custom_call.1} parent=1 // pred_check_branch
      %165 = sbr.rel (0) target = $region77
    $region76: #{tpu_custom_call.1} parent=1 // pred_region
      %167 = dma.done [#allocation14], 256
    $region77: #{tpu_custom_call.1} parent=1 // pred_fallthru
      _
    // Predicated region
    $region78: #{tpu_custom_call.1} parent=1 // pred_check
      _
    $region79: #{tpu_custom_call.1} parent=1 // pred_check_branch
      %169 = sbr.rel (0) target = $region81
    $region80: #{tpu_custom_call.1} parent=1 // pred_region
      %171 = dma.done [#allocation17], 16
    $region81: #{tpu_custom_call.1} parent=1 // pred_fallthru
      _
    // Predicated region
    $region82: #{tpu_custom_call.1} parent=1 // pred_check
      _
    $region83: #{tpu_custom_call.1} parent=1 // pred_check_branch
      %173 = sbr.rel (0) target = $region85
    $region84: #{tpu_custom_call.1} parent=1 // pred_region
      %175 = dma.done [#allocation17], 768
    $region85: #{tpu_custom_call.1} parent=1 // pred_fallthru
      _
    // Predicated region
    $region86: #{tpu_custom_call.1} parent=1 // pred_check
      _
    $region87: #{tpu_custom_call.1} parent=1 // pred_check_branch
      %177 = sbr.rel (0) target = $region89
    $region88: #{tpu_custom_call.1} parent=1 // pred_region
      %179 = dma.done [#allocation20], 768
    $region89: #{tpu_custom_call.1} parent=1 // pred_fallthru
      _
    %s181 = smul.u32 0, 2
    %s182 = sld [smem:[#allocation5 + %s181]]
    %s183 = scalar_lea.vmem %s3, %s182
    // Predicated region
    $region90: #{tpu_custom_call.1} parent=1 // pred_check
      _
    $region91: #{tpu_custom_call.1} parent=1 // pred_check_branch
      %185 = sbr.rel target = $region93
    $region92: #{tpu_custom_call.1} parent=1 // pred_region
      // Predicated region
      $region105: #{tpu_custom_call.1} parent=92 // pred_check
        _
      $region106: #{tpu_custom_call.1} parent=92 // pred_check_branch
        %201 = sbr.rel (0) target = $region108
      $region107: #{tpu_custom_call.1} parent=92 // pred_region
        %s203 = ssub.s32 2, 1
        loop: start=0, step=1, limit=1
        $region109: #{tpu_custom_call.1} parent=107 // loop_pre_header
          _
        $region110: #{tpu_custom_call.1} parent=107 // loop_header
          %s205 = sphi 0, %s209
          %p206 = scmp.ge.s32.totalorder %s205, 1
          %s210 = sphi %s183, %s183
          %s211 = sphi [#allocation2], [#allocation2]
        $region111: #{tpu_custom_call.1} parent=107 // loop_header_branch
          %208 = sbr.rel (%p206) target = $region115
        $region112: #{tpu_custom_call.1} parent=107 // loop_body
          %v212 = vld [vmem:[%s210] sm:%s203]
          %213 = vst [vmem:[%s211] sm:%s203] %v212
        $region113: #{tpu_custom_call.1} parent=107 // loop_footer
          %s209 = sadd.s32 1, %s205
        $region114: #{tpu_custom_call.1} parent=107 // loop_footer_branch
          %204 = sbr.rel target = $region110
        $region115: #{tpu_custom_call.1} parent=107 // loop_exit
          _
      $region108: #{tpu_custom_call.1} parent=92 // pred_fallthru
        _
    $region93: #{tpu_custom_call.1} parent=1 // pred_fallthru
      _
    // Predicated region
    $region94: #{tpu_custom_call.1} parent=1 // pred_check
      _
    $region95: #{tpu_custom_call.1} parent=1 // pred_check_branch
      %187 = sbr.rel (0) target = $region97
    $region96: #{tpu_custom_call.1} parent=1 // pred_region
      %s189 = ssub.s32 2, 1
      loop: start=0, step=1, limit=1
      $region98: #{tpu_custom_call.1} parent=96 // loop_pre_header
        _
      $region99: #{tpu_custom_call.1} parent=96 // loop_header
        %s191 = sphi 0, %s195
        %p192 = scmp.ge.s32.totalorder %s191, 1
        %s196 = sphi %s183, %s183
        %s197 = sphi [#allocation2], [#allocation2]
      $region100: #{tpu_custom_call.1} parent=96 // loop_header_branch
        %194 = sbr.rel (%p192) target = $region104
      $region101: #{tpu_custom_call.1} parent=96 // loop_body
        %v198 = vld [vmem:[%s196] sm:%s189]
        %199 = vst [vmem:[%s197] sm:%s189] %v198
      $region102: #{tpu_custom_call.1} parent=96 // loop_footer
        %s195 = sadd.s32 1, %s191
      $region103: #{tpu_custom_call.1} parent=96 // loop_footer_branch
        %190 = sbr.rel target = $region99
      $region104: #{tpu_custom_call.1} parent=96 // loop_exit
        _
    $region97: #{tpu_custom_call.1} parent=1 // pred_fallthru
      _
    // Predicated region
    $region116: #{tpu_custom_call.1} parent=1 // pred_check
      _
    $region117: #{tpu_custom_call.1} parent=1 // pred_check_branch
      %216 = sbr.rel (0) target = $region119
    $region118: #{tpu_custom_call.1} parent=1 // pred_region
      %217 = vsyncadd [#allocation3], 16
    $region119: #{tpu_custom_call.1} parent=1 // pred_fallthru
      _
    %s218 = sadd.s32 %s181, 1
    %s219 = sld [smem:[#allocation5 + %s218]]
    %s220 = scalar_lea.vmem %s3, %s219
    %s221 = scalar_lea.vmem [#allocation2], 1
    %s222 = scalar_lea.sflag [#allocation3], 1
    // Predicated region
    $region120: #{tpu_custom_call.1} parent=1 // pred_check
      _
    $region121: #{tpu_custom_call.1} parent=1 // pred_check_branch
      %224 = sbr.rel target = $region123
    $region122: #{tpu_custom_call.1} parent=1 // pred_region
      // Predicated region
      $region135: #{tpu_custom_call.1} parent=122 // pred_check
        _
      $region136: #{tpu_custom_call.1} parent=122 // pred_check_branch
        %240 = sbr.rel (0) target = $region138
      $region137: #{tpu_custom_call.1} parent=122 // pred_region
        %s242 = ssub.s32 2, 1
        loop: start=0, step=1, limit=1
        $region139: #{tpu_custom_call.1} parent=137 // loop_pre_header
          _
        $region140: #{tpu_custom_call.1} parent=137 // loop_header
          %s244 = sphi 0, %s248
          %p245 = scmp.ge.s32.totalorder %s244, 1
          %s249 = sphi %s220, %s220
          %s250 = sphi %s221, %s221
        $region141: #{tpu_custom_call.1} parent=137 // loop_header_branch
          %247 = sbr.rel (%p245) target = $region145
        $region142: #{tpu_custom_call.1} parent=137 // loop_body
          %v251 = vld [vmem:[%s249] sm:%s242]
          %252 = vst [vmem:[%s250] sm:%s242] %v251
        $region143: #{tpu_custom_call.1} parent=137 // loop_footer
          %s248 = sadd.s32 1, %s244
        $region144: #{tpu_custom_call.1} parent=137 // loop_footer_branch
          %243 = sbr.rel target = $region140
        $region145: #{tpu_custom_call.1} parent=137 // loop_exit
          _
      $region138: #{tpu_custom_call.1} parent=122 // pred_fallthru
        _
    $region123: #{tpu_custom_call.1} parent=1 // pred_fallthru
      _
    // Predicated region
    $region124: #{tpu_custom_call.1} parent=1 // pred_check
      _
    $region125: #{tpu_custom_call.1} parent=1 // pred_check_branch
      %226 = sbr.rel (0) target = $region127
    $region126: #{tpu_custom_call.1} parent=1 // pred_region
      %s228 = ssub.s32 2, 1
      loop: start=0, step=1, limit=1
      $region128: #{tpu_custom_call.1} parent=126 // loop_pre_header
        _
      $region129: #{tpu_custom_call.1} parent=126 // loop_header
        %s230 = sphi 0, %s234
        %p231 = scmp.ge.s32.totalorder %s230, 1
        %s235 = sphi %s220, %s220
        %s236 = sphi %s221, %s221
      $region130: #{tpu_custom_call.1} parent=126 // loop_header_branch
        %233 = sbr.rel (%p231) target = $region134
      $region131: #{tpu_custom_call.1} parent=126 // loop_body
        %v237 = vld [vmem:[%s235] sm:%s228]
        %238 = vst [vmem:[%s236] sm:%s228] %v237
      $region132: #{tpu_custom_call.1} parent=126 // loop_footer
        %s234 = sadd.s32 1, %s230
      $region133: #{tpu_custom_call.1} parent=126 // loop_footer_branch
        %229 = sbr.rel target = $region129
      $region134: #{tpu_custom_call.1} parent=126 // loop_exit
        _
    $region127: #{tpu_custom_call.1} parent=1 // pred_fallthru
      _
    // Predicated region
    $region146: #{tpu_custom_call.1} parent=1 // pred_check
      _
    $region147: #{tpu_custom_call.1} parent=1 // pred_check_branch
      %255 = sbr.rel (0) target = $region149
    $region148: #{tpu_custom_call.1} parent=1 // pred_region
      %256 = vsyncadd %s222, 16
    $region149: #{tpu_custom_call.1} parent=1 // pred_fallthru
      _
    %v257 = vld [vmem:[%s1] sm:$0xf]
    %v258 = vld [vmem:[%s1 + $0x4] sm:$0xf]
    %v259 = vunpack.c.l.bf16 %v257
    %v260 = vunpack.c.l.bf16 %v258
    %v261 = vld [vmem:[#allocation7] sm:$0x3]
    %v262 = vpack.c.bf16 %v261, %v261
    %v263 = vld [vmem:[#allocation10] sm:$0xf]
    %v264 = vld [vmem:[#allocation10 + $0x4] sm:$0xf]
    %v265 = vld [vmem:[#allocation10 + $0x8] sm:$0xf]
    %v266 = vld [vmem:[#allocation10 + $0xc] sm:$0xf]
    %v267 = vld [vmem:[#allocation12] sm:$0x1]
    %v269 = vperm.slane %v267, 0
    %v275 = vunpack.c.l.b16 %v263
    %v276 = vunpack.c.l.b16 %v264
    %v277 = vunpack.c.l.b16 %v265
    %v278 = vunpack.c.l.b16 %v266
    %v279 = vpack.c.b16 %v276, %v275
    %v280 = vpack.c.b16 %v278, %v277
    %vm283 = vcmask 261120
    %v285 = vsel %vm283, %v262, 0
    %287 = vmatpush.bf16.msra.mxu0 0
    %288 = vmatpush.bf16.msra.mxu0 0
    %289 = vmatpush.bf16.msra.mxu0 0
    %290 = vmatpush.bf16.msra.mxu0 0
    %291 = vmatpush.bf16.msra.mxu0 0
    %292 = vmatpush.bf16.msra.mxu0 0
    %293 = vmatpush.bf16.msra.mxu0 %v280
    %294 = vmatpush.bf16.msra.mxu0 %v279
    %295 = vmatmul.bf16.gmra.mxu0 %v285
    %v296 = vpop.f32.mrf.mxu0
    %v297 = vadd.f32 %v269, %v296
    %v298 = vpop.f32.mrf.mxu0
    %299 = vdwg.mxu0
    %s300 = sld [smem:[#allocation5 + %s181]]
    %s301 = smul.u32 1, 1
    %s302 = sshll.u32 %s301, 4
    %303 = dma.done [#allocation3], %s302
    %s304 = sld [smem:[#allocation5 + %s218]]
    %s305 = sshll.u32 %s301, 4
    %306 = dma.done %s222, %s305
    %v307 = vld [vmem:[#allocation2] sm:$0x3]
    %v308 = vadd.f32 %v297, %v307
    %v309 = vtanh.pop %v308
    %v310 = vld [vmem:[#allocation13] sm:$0x1]
    %v312 = vperm.slane %v310, 0
    %v314 = vmul.f32 %v259, %v312
    %v315 = vmul.f32 %v260, %v312
    %v316 = vsel %vm283, %v314, 0.0
    %317 = vadd.xlane.f32.xlu0 %v316
    %v318 = vpop.xlane.xlu0 %317
    %v319 = vsel %vm283, %v315, 0.0
    %320 = vadd.xlane.f32.xlu0 %v319
    %v321 = vpop.xlane.xlu0 %320
    %v322 = vmul.f32 %v309, %v312
    %vm323 = vcmask 254976
    %v324 = vsel %vm323, %v322, 0.0
    %325 = vadd.xlane.f32.xlu0 %v324
    %v326 = vpop.xlane.xlu0 %325
    %v328 = vperm.slane %v326, 0
    %v329 = vperm.slane %v326, 1
    %v332 = vadd.f32 %v318, %v328
    %v333 = vadd.f32 %v321, %v329
    %s334 = sld [smem:[#allocation6]]
    %v335 = vstv %s334
    %v336 = vadd.f32 %v332, %v335
    %v337 = vadd.f32 %v333, %v335
    %340 = vset.pattern.permute.xlu0 0
    %341 = vperm.xlu0 %340, %v336
    %v342 = vpop.permute.xlu0 %341
    %343 = vset.pattern.permute.xlu0 0
    %344 = vperm.xlu0 %343, %v337
    %v345 = vpop.permute.xlu0 %344
    %v346 = vlaneseq
    %v347 = vand.u32 %v346, 127
    %v348 = vperm.slane %v342, %v347
    %v349 = vperm.slane %v345, %v347
    %vm350 = vcmask 1041409
    %v351 = vsel %vm350, %v349, %v348
    %vm353 = vcmask 58368
    %v354 = vsel %vm353, %v351, -inf
    %355 = vmax.xlane.f32.xlu0 %v354
    %v356 = vpop.xlane.xlu0 %355
    %v358 = vperm.slane %v356, 0
    %v359 = vperm.slane %v356, 1
    %v362 = vsub.f32 %v336, %v358
    %v363 = vsub.f32 %v337, %v359
    %v364 = vmul.f32 %v362, 1.442695
    %v365 = vpow.pop %v364
    %v366 = vmul.f32 %v363, 1.442695
    %v367 = vpow.pop %v366
    %370 = vset.pattern.permute.xlu0 0
    %371 = vperm.xlu0 %370, %v365
    %v372 = vpop.permute.xlu0 %371
    %373 = vset.pattern.permute.xlu0 0
    %374 = vperm.xlu0 %373, %v367
    %v375 = vpop.permute.xlu0 %374
    %v376 = vperm.slane %v372, %v347
    %v377 = vperm.slane %v375, %v347
    %v378 = vsel %vm350, %v377, %v376
    %v380 = vsel %vm353, %v378, 0.0
    %381 = vadd.xlane.f32.xlu0 %v380
    %v382 = vpop.xlane.xlu0 %381
    %v383 = vrcp.pop %v382
    %v385 = vperm.slane %v383, 0
    %v386 = vperm.slane %v383, 1
    %v389 = vmul.f32 %v365, %v385
    %v390 = vmul.f32 %v367, %v386
    %393 = vset.pattern.permute.xlu0 0
    %394 = vperm.xlu0 %393, %v389
    %v395 = vpop.permute.xlu0 %394
    %396 = vset.pattern.permute.xlu0 0
    %397 = vperm.xlu0 %396, %v390
    %v398 = vpop.permute.xlu0 %397
    %v399 = vperm.slane %v395, %v347
    %v400 = vperm.slane %v398, %v347
    %v401 = vsel %vm350, %v400, %v399
    %403 = vst.msk [vmem:[#allocation24] sm:$0x3] %vm353, %v401
    %v406 = vmul.f32 %v395, %v259
    %v407 = vmul.f32 %v398, %v260
    %v408 = vsel %vm283, %v406, 0.0
    %v409 = vrot.slane %v408, 4
    %v410 = vadd.f32 %v408, %v409
    %v411 = vrot.slane %v410, 2
    %v412 = vadd.f32 %v410, %v411
    %v413 = vrot.slane %v412, 1
    %v414 = vadd.f32 %v412, %v413
    %v415 = vsel %vm283, %v407, 0.0
    %v416 = vrot.slane %v415, 4
    %v417 = vadd.f32 %v415, %v416
    %v418 = vrot.slane %v417, 2
    %v419 = vadd.f32 %v417, %v418
    %v420 = vrot.slane %v419, 1
    %v421 = vadd.f32 %v419, %v420
    %v422 = vpack.c.bf16 %v414, %v414
    %v423 = vpack.c.bf16 %v421, %v421
    %v424 = vld [vmem:[#allocation15] sm:$0xf]
    %v425 = vld [vmem:[#allocation15 + $0x4] sm:$0xf]
    %v426 = vld [vmem:[#allocation15 + $0x8] sm:$0xf]
    %v427 = vld [vmem:[#allocation15 + $0xc] sm:$0xf]
    %v428 = vld [vmem:[#allocation16] sm:$0x1]
    %v430 = vperm.slane %v428, 0
    %v434 = vunpack.c.l.b16 %v422
    %v435 = vunpack.c.l.b16 %v423
    %v436 = vsel %vm350, %v435, %v434
    %v437 = vpack.c.b16 %v436, %v436
    %v442 = vunpack.c.l.b16 %v424
    %v443 = vunpack.c.l.b16 %v425
    %v444 = vunpack.c.l.b16 %v426
    %v445 = vunpack.c.l.b16 %v427
    %v446 = vpack.c.b16 %v443, %v442
    %v447 = vpack.c.b16 %v445, %v444
    %v451 = vsel %vm283, %v437, 0
    %453 = vmatpush.bf16.msra.mxu0 0
    %454 = vmatpush.bf16.msra.mxu0 0
    %455 = vmatpush.bf16.msra.mxu0 0
    %456 = vmatpush.bf16.msra.mxu0 0
    %457 = vmatpush.bf16.msra.mxu0 0
    %458 = vmatpush.bf16.msra.mxu0 0
    %459 = vmatpush.bf16.msra.mxu0 %v447
    %460 = vmatpush.bf16.msra.mxu0 %v446
    %461 = vmatmul.bf16.gmra.mxu0 %v451
    %v462 = vpop.f32.mrf.mxu0
    %v463 = vadd.f32 %v430, %v462
    %v464 = vpop.f32.mrf.mxu0
    %465 = vdwg.mxu0
    %vm466 = vcmp.gt.f32.partialorder %v463, 0.0
    %v467 = vmul.f32 %v463, 0.01
    %v468 = vsel %vm466, %v463, %v467
    %v469 = vpack.c.bf16 %v468, %v468
    %v470 = vld [vmem:[#allocation18] sm:$0xf]
    %v471 = vld [vmem:[#allocation18 + $0x4] sm:$0xf]
    %v472 = vld [vmem:[#allocation18 + $0x8] sm:$0xf]
    %v473 = vld [vmem:[#allocation18 + $0xc] sm:$0xf]
    %v474 = vld [vmem:[%s11] sm:$0x1]
    %v476 = vperm.slane %v474, 0
    %v482 = vunpack.c.l.b16 %v470
    %v483 = vunpack.c.l.b16 %v471
    %v484 = vunpack.c.l.b16 %v472
    %v485 = vunpack.c.l.b16 %v473
    %v486 = vpack.c.b16 %v483, %v482
    %v487 = vpack.c.b16 %v485, %v484
    %v491 = vsel %vm283, %v469, 0
    %493 = vmatpush.bf16.msra.mxu0 0
    %494 = vmatpush.bf16.msra.mxu0 0
    %495 = vmatpush.bf16.msra.mxu0 0
    %496 = vmatpush.bf16.msra.mxu0 0
    %497 = vmatpush.bf16.msra.mxu0 0
    %498 = vmatpush.bf16.msra.mxu0 0
    %499 = vmatpush.bf16.msra.mxu0 %v487
    %500 = vmatpush.bf16.msra.mxu0 %v486
    %501 = vmatmul.bf16.gmra.mxu0 %v491
    %v502 = vpop.f32.mrf.mxu0
    %v503 = vadd.f32 %v476, %v502
    %v504 = vpop.f32.mrf.mxu0
    %505 = vdwg.mxu0
    %v506 = vld [vmem:[#allocation19] sm:$0xf]
    %v507 = vld [vmem:[#allocation19 + $0x4] sm:$0xf]
    %v508 = vld [vmem:[#allocation19 + $0x8] sm:$0xf]
    %v509 = vld [vmem:[#allocation19 + $0xc] sm:$0xf]
    %v510 = vld [vmem:[%s13] sm:$0x1]
    %v512 = vperm.slane %v510, 0
    %v518 = vunpack.c.l.b16 %v506
    %v519 = vunpack.c.l.b16 %v507
    %v520 = vunpack.c.l.b16 %v508
    %v521 = vunpack.c.l.b16 %v509
    %v522 = vpack.c.b16 %v519, %v518
    %v523 = vpack.c.b16 %v521, %v520
    %526 = vmatpush.bf16.msra.mxu0 0
    %527 = vmatpush.bf16.msra.mxu0 0
    %528 = vmatpush.bf16.msra.mxu0 0
    %529 = vmatpush.bf16.msra.mxu0 0
    %530 = vmatpush.bf16.msra.mxu0 0
    %531 = vmatpush.bf16.msra.mxu0 0
    %532 = vmatpush.bf16.msra.mxu0 %v523
    %533 = vmatpush.bf16.msra.mxu0 %v522
    %534 = vmatmul.bf16.gmra.mxu0 %v285
    %v535 = vpop.f32.mrf.mxu0
    %v536 = vadd.f32 %v512, %v535
    %v537 = vpop.f32.mrf.mxu0
    %538 = vdwg.mxu0
    %s539 = scalar_lea.vmem [#allocation18], 16
    %v540 = vld [vmem:[%s539] sm:$0xf]
    %v541 = vld [vmem:[%s539 + $0x4] sm:$0xf]
    %v542 = vld [vmem:[%s539 + $0x8] sm:$0xf]
    %v543 = vld [vmem:[%s539 + $0xc] sm:$0xf]
    %s544 = scalar_lea.vmem %s11, 1
    %v545 = vld [vmem:[%s544] sm:$0x1]
    %v547 = vperm.slane %v545, 0
    %v553 = vunpack.c.l.b16 %v540
    %v554 = vunpack.c.l.b16 %v541
    %v555 = vunpack.c.l.b16 %v542
    %v556 = vunpack.c.l.b16 %v543
    %v557 = vpack.c.b16 %v554, %v553
    %v558 = vpack.c.b16 %v556, %v555
    %561 = vmatpush.bf16.msra.mxu0 0
    %562 = vmatpush.bf16.msra.mxu0 0
    %563 = vmatpush.bf16.msra.mxu0 0
    %564 = vmatpush.bf16.msra.mxu0 0
    %565 = vmatpush.bf16.msra.mxu0 0
    %566 = vmatpush.bf16.msra.mxu0 0
    %567 = vmatpush.bf16.msra.mxu0 %v558
    %568 = vmatpush.bf16.msra.mxu0 %v557
    %569 = vmatmul.bf16.gmra.mxu0 %v491
    %v570 = vpop.f32.mrf.mxu0
    %v571 = vadd.f32 %v547, %v570
    %v572 = vpop.f32.mrf.mxu0
    %573 = vdwg.mxu0
    %s574 = scalar_lea.vmem [#allocation19], 16
    %v575 = vld [vmem:[%s574] sm:$0xf]
    %v576 = vld [vmem:[%s574 + $0x4] sm:$0xf]
    %v577 = vld [vmem:[%s574 + $0x8] sm:$0xf]
    %v578 = vld [vmem:[%s574 + $0xc] sm:$0xf]
    %s579 = scalar_lea.vmem %s13, 1
    %v580 = vld [vmem:[%s579] sm:$0x1]
    %v582 = vperm.slane %v580, 0
    %v588 = vunpack.c.l.b16 %v575
    %v589 = vunpack.c.l.b16 %v576
    %v590 = vunpack.c.l.b16 %v577
    %v591 = vunpack.c.l.b16 %v578
    %v592 = vpack.c.b16 %v589, %v588
    %v593 = vpack.c.b16 %v591, %v590
    %596 = vmatpush.bf16.msra.mxu0 0
    %597 = vmatpush.bf16.msra.mxu0 0
    %598 = vmatpush.bf16.msra.mxu0 0
    %599 = vmatpush.bf16.msra.mxu0 0
    %600 = vmatpush.bf16.msra.mxu0 0
    %601 = vmatpush.bf16.msra.mxu0 0
    %602 = vmatpush.bf16.msra.mxu0 %v593
    %603 = vmatpush.bf16.msra.mxu0 %v592
    %604 = vmatmul.bf16.gmra.mxu0 %v285
    %v605 = vpop.f32.mrf.mxu0
    %v606 = vadd.f32 %v582, %v605
    %v607 = vpop.f32.mrf.mxu0
    %608 = vdwg.mxu0
    %s609 = scalar_lea.vmem [#allocation18], 32
    %v610 = vld [vmem:[%s609] sm:$0xf]
    %v611 = vld [vmem:[%s609 + $0x4] sm:$0xf]
    %v612 = vld [vmem:[%s609 + $0x8] sm:$0xf]
    %v613 = vld [vmem:[%s609 + $0xc] sm:$0xf]
    %s614 = scalar_lea.vmem %s11, 2
    %v615 = vld [vmem:[%s614] sm:$0x1]
    %v617 = vperm.slane %v615, 0
    %v623 = vunpack.c.l.b16 %v610
    %v624 = vunpack.c.l.b16 %v611
    %v625 = vunpack.c.l.b16 %v612
    %v626 = vunpack.c.l.b16 %v613
    %v627 = vpack.c.b16 %v624, %v623
    %v628 = vpack.c.b16 %v626, %v625
    %631 = vmatpush.bf16.msra.mxu0 0
    %632 = vmatpush.bf16.msra.mxu0 0
    %633 = vmatpush.bf16.msra.mxu0 0
    %634 = vmatpush.bf16.msra.mxu0 0
    %635 = vmatpush.bf16.msra.mxu0 0
    %636 = vmatpush.bf16.msra.mxu0 0
    %637 = vmatpush.bf16.msra.mxu0 %v628
    %638 = vmatpush.bf16.msra.mxu0 %v627
    %639 = vmatmul.bf16.gmra.mxu0 %v491
    %v640 = vpop.f32.mrf.mxu0
    %v641 = vadd.f32 %v617, %v640
    %v642 = vpop.f32.mrf.mxu0
    %643 = vdwg.mxu0
    %s644 = scalar_lea.vmem [#allocation19], 32
    %v645 = vld [vmem:[%s644] sm:$0xf]
    %v646 = vld [vmem:[%s644 + $0x4] sm:$0xf]
    %v647 = vld [vmem:[%s644 + $0x8] sm:$0xf]
    %v648 = vld [vmem:[%s644 + $0xc] sm:$0xf]
    %s649 = scalar_lea.vmem %s13, 2
    %v650 = vld [vmem:[%s649] sm:$0x1]
    %v652 = vperm.slane %v650, 0
    %v658 = vunpack.c.l.b16 %v645
    %v659 = vunpack.c.l.b16 %v646
    %v660 = vunpack.c.l.b16 %v647
    %v661 = vunpack.c.l.b16 %v648
    %v662 = vpack.c.b16 %v659, %v658
    %v663 = vpack.c.b16 %v661, %v660
    %666 = vmatpush.bf16.msra.mxu0 0
    %667 = vmatpush.bf16.msra.mxu0 0
    %668 = vmatpush.bf16.msra.mxu0 0
    %669 = vmatpush.bf16.msra.mxu0 0
    %670 = vmatpush.bf16.msra.mxu0 0
    %671 = vmatpush.bf16.msra.mxu0 0
    %672 = vmatpush.bf16.msra.mxu0 %v663
    %673 = vmatpush.bf16.msra.mxu0 %v662
    %674 = vmatmul.bf16.gmra.mxu0 %v285
    %v675 = vpop.f32.mrf.mxu0
    %v676 = vadd.f32 %v652, %v675
    %v677 = vpop.f32.mrf.mxu0
    %678 = vdwg.mxu0
    %v679 = vadd.f32 %v503, %v536
    %v680 = vxor.u32 %v679, 2147483648
    %v681 = vmul.f32 %v680, 1.442695
    %v682 = vpow.pop %v681
    %v683 = vadd.f32 %v682, 1.0
    %v684 = vrcp.pop %v683
    %v685 = vmul.f32 %v683, %v684
    %v686 = vsub.f32 1.0, %v685
    %v687 = vmul.f32 %v684, %v686
    %v688 = vadd.f32 %v684, %v687
    %vm689 = vweird.f32 %v683
    %vm690 = vweird.f32 %v684
    %vm691 = vmor %vm689, %vm690
    %v692 = vsel %vm691, %v684, %v688
    %v693 = vand.u32 2147483647, %v683
    %vm694 = vcmp.eq.f32.partialorder %v693, 8.507059e+37
    %v695 = vand.u32 %v683, 2147483648
    %v696 = vor.u32 1.1754944e-38, %v695
    %v697 = vsel %vm694, %v696, %v692
    %v698 = vmul.f32 1.0, %v697
    %v699 = vadd.f32 %v571, %v606
    %v700 = vxor.u32 %v699, 2147483648
    %v701 = vmul.f32 %v700, 1.442695
    %v702 = vpow.pop %v701
    %v703 = vadd.f32 %v702, 1.0
    %v704 = vrcp.pop %v703
    %v705 = vmul.f32 %v703, %v704
    %v706 = vsub.f32 1.0, %v705
    %v707 = vmul.f32 %v704, %v706
    %v708 = vadd.f32 %v704, %v707
    %vm709 = vweird.f32 %v703
    %vm710 = vweird.f32 %v704
    %vm711 = vmor %vm709, %vm710
    %v712 = vsel %vm711, %v704, %v708
    %v713 = vand.u32 2147483647, %v703
    %vm714 = vcmp.eq.f32.partialorder %v713, 8.507059e+37
    %v715 = vand.u32 %v703, 2147483648
    %v716 = vor.u32 1.1754944e-38, %v715
    %v717 = vsel %vm714, %v716, %v712
    %v718 = vmul.f32 1.0, %v717
    %v719 = vmul.f32 %v698, %v676
    %v720 = vadd.f32 %v641, %v719
    %v721 = vtanh.pop %v720
    %v722 = vsub.f32 1.0, %v718
    %v723 = vmul.f32 %v722, %v721
    %v724 = vmul.f32 %v718, %v261
    %v725 = vadd.f32 %v723, %v724
    %726 = vst.msk [vmem:[#allocation22] sm:$0x3] %vm323, %v725
    %v727 = vpack.c.bf16 %v725, %v725
    %v728 = vld [vmem:[%s14] sm:$0xf]
    %v729 = vld [vmem:[%s14 + $0x4] sm:$0xf]
    %v730 = vld [vmem:[%s14 + $0x8] sm:$0xf]
    %v731 = vld [vmem:[%s14 + $0xc] sm:$0xf]
    %v732 = vld [vmem:[%s15] sm:$0x1]
    %v734 = vperm.slane %v732, 0
    %v740 = vunpack.c.l.b16 %v728
    %v741 = vunpack.c.l.b16 %v729
    %v742 = vunpack.c.l.b16 %v730
    %v743 = vunpack.c.l.b16 %v731
    %v744 = vpack.c.b16 %v741, %v740
    %v745 = vpack.c.b16 %v743, %v742
    %v749 = vsel %vm283, %v727, 0
    %751 = vmatpush.bf16.msra.mxu0 0
    %752 = vmatpush.bf16.msra.mxu0 0
    %753 = vmatpush.bf16.msra.mxu0 0
    %754 = vmatpush.bf16.msra.mxu0 0
    %755 = vmatpush.bf16.msra.mxu0 0
    %756 = vmatpush.bf16.msra.mxu0 0
    %757 = vmatpush.bf16.msra.mxu0 %v745
    %758 = vmatpush.bf16.msra.mxu0 %v744
    %759 = vmatmul.bf16.gmra.mxu0 %v749
    %v760 = vpop.f32.mrf.mxu0
    %v761 = vadd.f32 %v734, %v760
    %v762 = vpop.f32.mrf.mxu0
    %763 = vdwg.mxu0
    %vm764 = vcmask 74752
    %v765 = vsel %vm764, %v761, -inf
    %766 = vmax.xlane.f32.xlu0 %v765
    %v767 = vpop.xlane.xlu0 %766
    %v768 = vsub.f32 %v761, %v767
    %v769 = vmul.f32 %v768, 1.442695
    %v770 = vpow.pop %v769
    %v771 = vsel %vm764, %v770, 0.0
    %772 = vadd.xlane.f32.xlu0 %v771
    %v773 = vpop.xlane.xlu0 %772
    %v774 = vlog2.pop %v773
    %v775 = vmul.f32 %v774, 0.6931472
    %v776 = vadd.f32 %v767, %v775
    %v777 = vsub.f32 %v761, %v776
    %778 = vst.msk [vmem:[#allocation21] sm:$0x3] %vm764, %v777
    // Predicated region
    $region150: #{tpu_custom_call.1} parent=1 // pred_check
      _
    $region151: #{tpu_custom_call.1} parent=1 // pred_check_branch
      %780 = sbr.rel (0) target = $region153
    $region152: #{tpu_custom_call.1} parent=1 // pred_region
      %782 = vsyncadd [#allocation9], 0
      %s784 = sshll.u32 [#allocation21], 4
      %s785 = int_to_ptr.vmem [resolvable:$true] %s784
      %s786 = sshll.u32 %s16, 4
      %s787 = int_to_ptr.hbm [resolvable:$true] %s786
      %789 = dma.vmem_to_hbm [thread:$0]  %s785, 32, %s787, [#allocation9]
    $region153: #{tpu_custom_call.1} parent=1 // pred_fallthru
      _
    // Predicated region
    $region154: #{tpu_custom_call.1} parent=1 // pred_check
      _
    $region155: #{tpu_custom_call.1} parent=1 // pred_check_branch
      %791 = sbr.rel (0) target = $region157
    $region156: #{tpu_custom_call.1} parent=1 // pred_region
      %793 = vsyncadd [#allocation23], 0
      %s795 = sshll.u32 [#allocation22], 4
      %s796 = int_to_ptr.vmem [resolvable:$true] %s795
      %s797 = sshll.u32 %s17, 4
      %s798 = int_to_ptr.hbm [resolvable:$true] %s797
      %800 = dma.vmem_to_hbm [thread:$0]  %s796, 32, %s798, [#allocation23]
    $region157: #{tpu_custom_call.1} parent=1 // pred_fallthru
      _
    // Predicated region
    $region158: #{tpu_custom_call.1} parent=1 // pred_check
      _
    $region159: #{tpu_custom_call.1} parent=1 // pred_check_branch
      %802 = sbr.rel (0) target = $region161
    $region160: #{tpu_custom_call.1} parent=1 // pred_region
      %804 = vsyncadd [#allocation23], 0
      %s806 = sshll.u32 [#allocation24], 4
      %s807 = int_to_ptr.vmem [resolvable:$true] %s806
      %s808 = sshll.u32 %s18, 4
      %s809 = int_to_ptr.hbm [resolvable:$true] %s808
      %811 = dma.vmem_to_hbm [thread:$0]  %s807, 32, %s809, [#allocation23]
    $region161: #{tpu_custom_call.1} parent=1 // pred_fallthru
      _
    // Predicated region
    $region162: #{tpu_custom_call.1} parent=1 // pred_check
      _
    $region163: #{tpu_custom_call.1} parent=1 // pred_check_branch
      %813 = sbr.rel (0) target = $region165
    $region164: #{tpu_custom_call.1} parent=1 // pred_region
      %815 = dma.done [#allocation9], 32
    $region165: #{tpu_custom_call.1} parent=1 // pred_fallthru
      _
    // Predicated region
    $region166: #{tpu_custom_call.1} parent=1 // pred_check
      _
    $region167: #{tpu_custom_call.1} parent=1 // pred_check_branch
      %817 = sbr.rel (0) target = $region169
    $region168: #{tpu_custom_call.1} parent=1 // pred_region
      %819 = dma.done [#allocation23], 32
    $region169: #{tpu_custom_call.1} parent=1 // pred_fallthru
      _
    // Predicated region
    $region170: #{tpu_custom_call.1} parent=1 // pred_check
      _
    $region171: #{tpu_custom_call.1} parent=1 // pred_check_branch
      %821 = sbr.rel (0) target = $region173
    $region172: #{tpu_custom_call.1} parent=1 // pred_region
      %823 = dma.done [#allocation23], 32
    $region173: #{tpu_custom_call.1} parent=1 // pred_fallthru
      _
    %824 = vsyncpa [#allocation8], 1
    %825 = vsyncpa [#allocation11], 1
    %826 = vsyncpa [#allocation14], 1
    %827 = vsyncpa [#allocation17], 1
    %828 = vsyncpa [#allocation20], 1
    %829 = vsyncpa [#allocation9], 1
    %830 = vsyncpa [#allocation23], 1
  %831 = vsyncmov [#allocation3]
  %s832 = vpop.sfrf %831
  %p833 = scmp.eq.s32.totalorder %s832, 0
  %p834 = pneg %p833
  %836 = shalt.err (%p834)
  %s837 = scalar_lea.sflag [#allocation3], 1
  %838 = vsyncmov %s837
  %s839 = vpop.sfrf %838
  %p840 = scmp.eq.s32.totalorder %s839, 0
  %p841 = pneg %p840
  %843 = shalt.err (%p841)

</llo_original>
